<compile_context>
chip_gen: v6e
topology: v6e:2x2x1
jax: 0.10.0
libtpu: 0.0.40
codegen_flags: <defaults>
</compile_context>

<pallas_src>
import functools

import jax
import jax.numpy as jnp
from jax.experimental import pallas as pl
from jax.experimental.pallas import tpu as pltpu

LANE = 128


def _round_up(x, m):
    return ((x + m - 1) // m) * m


def _pad2d(x, rows, cols, dtype=None):
    out = jnp.pad(x, ((0, rows - x.shape[0]), (0, cols - x.shape[1])))
    return out.astype(dtype) if dtype is not None else out


def _vmem_budget_bytes():
    """Generation-aware VMEM budget (v5e/v6e: 128 MiB, v7x: 64 MiB physical)."""
    try:
        cap = int(pltpu.get_tpu_info().vmem_capacity_bytes)
    except Exception:
        cap = 64 * 1024 * 1024  # conservative default (v7x physical VMEM)
    if cap <= 0:
        cap = 64 * 1024 * 1024
    return (cap * 3) // 4  # leave headroom for compiler-internal scratch


# -----------------------------------------------------------------------------
# Adjacency: dense normalized A_hat built directly in the kernel dtype.
#   A_hat[dst, src] = deg[dst]^-1/2 * w * deg[src]^-1/2,  deg = in-degree + 1
# (PyG GCNConv semantics with self loops).  One edge scatter + one diagonal
# scatter -- no separate f32 N^2 normalize / cast / pad passes.
# -----------------------------------------------------------------------------
def build_normalized_adjacency(edge_index, num_nodes, n_pad=None, dtype=jnp.float32):
    n_pad = num_nodes if n_pad is None else n_pad
    src = edge_index[0]
    dst = edge_index[1]
    deg = jnp.ones((num_nodes,), jnp.float32).at[dst].add(1.0)  # in-deg + self loop
    dinv = 1.0 / jnp.sqrt(deg)
    vals = dinv[dst] * dinv[src]
    idx = jnp.arange(num_nodes, dtype=jnp.int32)
    a = jnp.zeros((n_pad, n_pad), dtype)
    a = a.at[dst, src].add(vals.astype(dtype))            # duplicate edges sum
    a = a.at[idx, idx].add((dinv * dinv).astype(dtype))   # self loops
    return a


# -----------------------------------------------------------------------------
# Path 1 (small/medium graphs): one fused kernel, A_hat resident in VMEM.
# A_hat is read from HBM exactly once and both GCN layers are computed:
#   h     = relu(A_hat @ (X W1) + b1)
#   heads = A_hat @ (h @ [Wmu | Wls]) + [bmu | bls]
# bf16 MXU operands, f32 accumulation, f32 bias/ReLU.
# -----------------------------------------------------------------------------
def _fused_encoder_kernel(a_ref, xw1_ref, b1_ref, wh_ref, bh_ref, out_ref):
    a = a_ref[...]                                                  # bf16, resident
    h = jnp.dot(a, xw1_ref[...], preferred_element_type=jnp.float32)
    h = jnp.maximum(h + b1_ref[...], 0.0)                           # f32 VPU
    hw = jnp.dot(h.astype(jnp.bfloat16), wh_ref[...],
                 preferred_element_type=jnp.float32)
    heads = jnp.dot(a, hw.astype(jnp.bfloat16),
                    preferred_element_type=jnp.float32)
    out_ref[...] = heads + bh_ref[...]


def _fused_encoder(a_bf, xw1_bf, b1, wh_bf, bh, vmem_limit):
    n_pad = a_bf.shape[0]
    head_pad = wh_bf.shape[1]
    return pl.pallas_call(
        _fused_encoder_kernel,
        out_shape=jax.ShapeDtypeStruct((n_pad, head_pad), jnp.float32),
        compiler_params=pltpu.CompilerParams(vmem_limit_bytes=vmem_limit),
    )(a_bf, xw1_bf, b1, wh_bf, bh)


# -----------------------------------------------------------------------------
# Path 2 (large graphs): tiled GCN layer  out = act(A_hat @ Z + b), Z = X @ W.
# A_hat tiles stream over a (row tile i, reduction tile k) grid; Z stays
# resident in VMEM (constant index_map) and is sliced per reduction step.
# -----------------------------------------------------------------------------
def _gcn_layer_kernel(a_ref, z_ref, b_ref, o_ref, acc_ref, *, apply_relu, tk):
    k = pl.program_id(1)

    @pl.when(k == 0)
    def _():
        acc_ref[...] = jnp.zeros_like(acc_ref)

    start = pl.multiple_of(k * tk, tk)
    z_blk = z_ref[pl.ds(start, tk), :]          # resident Z, sliced (no re-DMA)
    acc_ref[...] += jnp.dot(a_ref[...], z_blk, preferred_element_type=jnp.float32)

    @pl.when(k == pl.num_programs(1) - 1)
    def _():
        out = acc_ref[...] + b_ref[...]
        if apply_relu:
            out = jnp.maximum(out, 0.0)
        o_ref[...] = out.astype(o_ref.dtype)


def _tiled_gcn_layer(a_bf, z_bf, b_f32, *, tm, tk, relu, out_dtype, vmem_limit):
    n_pad = a_bf.shape[0]
    c_pad = z_bf.shape[1]
    grid = (n_pad // tm, n_pad // tk)
    kernel = functools.partial(_gcn_layer_kernel, apply_relu=relu, tk=tk)
    return pl.pallas_call(
        kernel,
        out_shape=jax.ShapeDtypeStruct((n_pad, c_pad), out_dtype),
        grid_spec=pltpu.PrefetchScalarGridSpec(
            num_scalar_prefetch=0,
            grid=grid,
            in_specs=[
                pl.BlockSpec((tm, tk), lambda i, k: (i, k)),         # A_hat tile
                pl.BlockSpec((n_pad, c_pad), lambda i, k: (0, 0)),   # Z resident
                pl.BlockSpec((1, c_pad), lambda i, k: (0, 0)),       # bias
            ],
            out_specs=pl.BlockSpec((tm, c_pad), lambda i, k: (i, 0)),
            scratch_shapes=[pltpu.VMEM((tm, c_pad), jnp.float32)],   # f32 acc
        ),
        compiler_params=pltpu.CompilerParams(
            dimension_semantics=("parallel", "arbitrary"),
            vmem_limit_bytes=vmem_limit,
        ),
    )(a_bf, z_bf, b_f32)


def _pick_tiles(n_pad, c_pad, vmem_budget):
    """Tiles dividing n_pad: tm <= 512 with >=2 row tiles (v7x megacore),
    tk as large as the VMEM budget allows (DMA efficiency)."""
    divs = [d for d in range(LANE, n_pad + 1, LANE) if n_pad % d == 0]
    tm = divs[0]
    for d in divs:
        if d <= 512 and n_pad // d >= 2:
            tm = d
    tk = divs[0]
    for d in divs:
        # double-buffered A tile + (double-buffered) resident Z + acc + out
        need = (2 * tm * d * 2 + 2 * n_pad * c_pad * 2
                + tm * c_pad * 4 + 2 * tm * c_pad * 4 + (2 << 20))
        if need <= vmem_budget:
            tk = max(tk, d)
    return tm, tk


# -----------------------------------------------------------------------------
# Parameter init (deterministic): glorot-uniform weights, zero bias (PyG default)
# -----------------------------------------------------------------------------
def glorot(key, fan_in, fan_out):
    limit = jnp.sqrt(6.0 / (fan_in + fan_out))
    return jax.random.uniform(key, (fan_in, fan_out), jnp.float32, -limit, limit)


def init_variational_encoder(key, in_channels, out_channels):
    k1, k2, k3 = jax.random.split(key, 3)
    hidden = 2 * out_channels
    return {
        "conv1_w": glorot(k1, in_channels, hidden),
        "conv1_b": jnp.zeros((1, hidden), jnp.float32),
        "mu_w": glorot(k2, hidden, out_channels),
        "mu_b": jnp.zeros((1, out_channels), jnp.float32),
        "logstd_w": glorot(k3, hidden, out_channels),
        "logstd_b": jnp.zeros((1, out_channels), jnp.float32),
    }


# -----------------------------------------------------------------------------
# Forward pass (matches VariationalEncoder.forward)
# -----------------------------------------------------------------------------
def variational_encoder_forward(params, x, edge_index, *, force_tiled=False):
    n, _ = x.shape
    hidden = params["conv1_w"].shape[1]
    out_c = params["mu_w"].shape[1]

    bf = jnp.bfloat16
    n_pad = _round_up(n, LANE)             # lane legality only (quadratic A savings)
    hid_pad = _round_up(hidden, LANE)
    head_pad = _round_up(2 * out_c, LANE)

    # Dense normalized adjacency, built directly in bf16 at padded size.
    a_bf = build_normalized_adjacency(edge_index, n, n_pad, bf)

    # PyG GCNConv order: lin -> propagate -> +bias, i.e.  A_hat @ (X @ W) + b.
    # X @ W1 is tiny (N x hidden); precompute once so only A_hat is streamed.
    xw1_bf = _pad2d(x @ params["conv1_w"], n_pad, hid_pad, bf)
    b1 = _pad2d(params["conv1_b"], 1, hid_pad, jnp.float32)

    # mu / logstd heads fused along output channels.
    wh_bf = _pad2d(jnp.concatenate([params["mu_w"], params["logstd_w"]], 1),
                   hid_pad, head_pad, bf)
    bh = _pad2d(jnp.concatenate([params["mu_b"], params["logstd_b"]], 1),
                1, head_pad, jnp.float32)

    vmem_budget = _vmem_budget_bytes()
    # Fused path needs A_hat + activations resident in VMEM.
    fused_need = 2 * n_pad * n_pad + 16 * n_pad * max(hid_pad, head_pad) + (2 << 20)

    if (not force_tiled) and fused_need <= (vmem_budget * 3) // 5:
        # A_hat read from HBM once, single launch.
        heads = _fused_encoder(a_bf, xw1_bf, b1, wh_bf, bh, vmem_budget)
    else:
        tm, tk = _pick_tiles(n_pad, max(hid_pad, head_pad), vmem_budget)
        # Layer 1: h = relu(A @ (X W1) + b1)   (lane-padded bf16 in HBM)
        h_bf = _tiled_gcn_layer(a_bf, xw1_bf, b1, tm=tm, tk=tk, relu=True,
                                out_dtype=bf, vmem_limit=vmem_budget)
        # Tiny feature transform for the fused heads, then one more A pass.
        hw_bf = jnp.dot(h_bf, wh_bf,
                        preferred_element_type=jnp.float32).astype(bf)
        heads = _tiled_gcn_layer(a_bf, hw_bf, bh, tm=tm, tk=tk, relu=False,
                                 out_dtype=jnp.float32, vmem_limit=vmem_budget)

    mu = heads[:n, :out_c]
    logstd = heads[:n, out_c:2 * out_c]
    return mu, logstd


# -----------------------------------------------------------------------------
# References for correctness checking
# -----------------------------------------------------------------------------
def _reference_matched(params, x, edge_index):
    """Mimics kernel numerics: bf16 operands, f32 accumulation, A@(XW) order."""
    n = x.shape[0]
    out_c = params["mu_w"].shape[1]
    bf, f32 = jnp.bfloat16, jnp.float32
    a = build_normalized_adjacency(edge_index, n, n, bf).astype(f32)
    xw1 = (x @ params["conv1_w"]).astype(bf).astype(f32)
    h = jnp.maximum(a @ xw1 + params["conv1_b"], 0.0)
    wh = jnp.concatenate([params["mu_w"], params["logstd_w"]], 1).astype(bf).astype(f32)
    hw = (h.astype(bf).astype(f32) @ wh).astype(bf).astype(f32)
    bh = jnp.concatenate([params["mu_b"], params["logstd_b"]], 1)
    heads = a @ hw + bh
    return heads[:, :out_c], heads[:, out_c:2 * out_c]


def _reference_f32(params, x, edge_index):
    """Pure f32 reference with PyG GCNConv semantics."""
    n = x.shape[0]
    a = build_normalized_adjacency(edge_index, n, n, jnp.float32)
    h = jnp.maximum(a @ (x @ params["conv1_w"]) + params["conv1_b"], 0.0)
    mu = a @ (h @ params["mu_w"]) + params["mu_b"]
    logstd = a @ (h @ params["logstd_w"]) + params["logstd_b"]
    return mu, logstd


if __name__ == "__main__":
    key = jax.random.PRNGKey(0)
    k_x, k_p = jax.random.split(key)

    # Small graph: N=300 nodes (pads to 384, not 512), in=16, out=8.
    N, IN_C, OUT_C = 300, 16, 8
    x = jax.random.normal(k_x, (N, IN_C), jnp.float32)

    # Deterministic undirected ring graph (both directions), E = 2*N edges.
    fwd_src = jnp.arange(N, dtype=jnp.int32)
    fwd_dst = (fwd_src + 1) % N
    edge_index = jnp.stack(
        [jnp.concatenate([fwd_src, fwd_dst]), jnp.concatenate([fwd_dst, fwd_src])],
        axis=0,
    )

    params = init_variational_encoder(k_p, IN_C, OUT_C)

    fwd = jax.jit(variational_encoder_forward, static_argnames=("force_tiled",))

    # Primary path: fused single-launch kernel (A_hat read from HBM once).
    mu, logstd = fwd(params, x, edge_index)
    jax.block_until_ready((mu, logstd))
    assert mu.shape == (N, OUT_C) and logstd.shape == (N, OUT_C)

    # Large-graph fallback: tiled per-layer kernels (validated here too).
    mu_t, logstd_t = fwd(params, x, edge_index, force_tiled=True)
    jax.block_until_ready((mu_t, logstd_t))

    # Strict check against a reference with the same bf16/f32 numerics.
    mu_m, ls_m = _reference_matched(params, x, edge_index)
    for m, l in ((mu, logstd), (mu_t, logstd_t)):
        assert jnp.allclose(m, mu_m, atol=2e-2, rtol=2e-2)
        assert jnp.allclose(l, ls_m, atol=2e-2, rtol=2e-2)

    # Loose sanity check against the pure-f32 reference (bf16 operands diverge
    # beyond tight tolerances, as expected).
    mu_f, ls_f = _reference_f32(params, x, edge_index)
    assert jnp.allclose(mu, mu_f, atol=1e-1, rtol=1e-1)
    assert jnp.allclose(logstd, ls_f, atol=1e-1, rtol=1e-1)

    print("KERNEL_OK")
</pallas_src>

<mosaic_0001>
module attributes {stable_mosaic.version = 11 : i64} {
  func.func private @main(%arg0: i32) attributes {dimension_semantics = [#tpu.dimension_semantics<core_parallel>], iteration_bounds = array<i64: 2>, tpu.core_type = #tpu.core_type<sc_scalar_subcore>, window_params = []} {
    return
  }
}

module attributes {stable_mosaic.version = 11 : i64} {
  func.func private @main(%arg0: i32) attributes {dimension_semantics = [#tpu.dimension_semantics<core_parallel>], iteration_bounds = array<i64: 2>, tpu.core_type = #tpu.core_type<sc_scalar_subcore>, window_params = []} {
    return
  }
}

module attributes {stable_mosaic.version = 11 : i64} {
  func.func @_fused_encoder_kernel(%arg0: memref<384x384xbf16, #tpu.memory_space<vmem>>, %arg1: memref<384x128xbf16, #tpu.memory_space<vmem>>, %arg2: memref<1x128xf32, #tpu.memory_space<vmem>>, %arg3: memref<128x128xbf16, #tpu.memory_space<vmem>>, %arg4: memref<1x128xf32, #tpu.memory_space<vmem>>, %arg5: memref<384x128xf32, #tpu.memory_space<vmem>>) attributes {dimension_semantics = [], scalar_prefetch = 0 : i64, scratch_operands = 0 : i64, tpu.core_type = #tpu.core_type<tc>} {
    %c0 = arith.constant 0 : index
    %c0_0 = arith.constant 0 : index
    %0 = vector.load %arg0[%c0, %c0_0] : memref<384x384xbf16, #tpu.memory_space<vmem>>, vector<384x384xbf16>
    %c0_1 = arith.constant 0 : index
    %c0_2 = arith.constant 0 : index
    %1 = vector.load %arg1[%c0_1, %c0_2] : memref<384x128xbf16, #tpu.memory_space<vmem>>, vector<384x128xbf16>
    %cst = arith.constant dense<0.000000e+00> : vector<384x128xf32>
    %2 = tpu.matmul %0, %1, %cst {dimension_numbers = #tpu.dot_dimension_numbers<[1], [0], [0], [1], [0, 0, 1, 1], [], []>} : vector<384x384xbf16>, vector<384x128xbf16>, vector<384x128xf32> -> vector<384x128xf32>
    %c0_3 = arith.constant 0 : index
    %c0_4 = arith.constant 0 : index
    %3 = vector.load %arg2[%c0_3, %c0_4] : memref<1x128xf32, #tpu.memory_space<vmem>>, vector<1x128xf32>
    %4 = vector.broadcast %3 : vector<1x128xf32> to vector<384x128xf32>
    %5 = arith.addf %2, %4 : vector<384x128xf32>
    %cst_5 = arith.constant 0.000000e+00 : f32
    %6 = vector.broadcast %cst_5 : f32 to vector<384x128xf32>
    %7 = arith.maximumf %5, %6 : vector<384x128xf32>
    %8 = arith.truncf %7 : vector<384x128xf32> to vector<384x128xbf16>
    %c0_6 = arith.constant 0 : index
    %c0_7 = arith.constant 0 : index
    %9 = vector.load %arg3[%c0_6, %c0_7] : memref<128x128xbf16, #tpu.memory_space<vmem>>, vector<128x128xbf16>
    %cst_8 = arith.constant dense<0.000000e+00> : vector<384x128xf32>
    %10 = tpu.matmul %8, %9, %cst_8 {dimension_numbers = #tpu.dot_dimension_numbers<[1], [0], [0], [1], [0, 0, 1, 1], [], []>} : vector<384x128xbf16>, vector<128x128xbf16>, vector<384x128xf32> -> vector<384x128xf32>
    %11 = arith.truncf %10 : vector<384x128xf32> to vector<384x128xbf16>
    %cst_9 = arith.constant dense<0.000000e+00> : vector<384x128xf32>
    %12 = tpu.matmul %0, %11, %cst_9 {dimension_numbers = #tpu.dot_dimension_numbers<[1], [0], [0], [1], [0, 0, 1, 1], [], []>} : vector<384x384xbf16>, vector<384x128xbf16>, vector<384x128xf32> -> vector<384x128xf32>
    %c0_10 = arith.constant 0 : index
    %c0_11 = arith.constant 0 : index
    %13 = vector.load %arg4[%c0_10, %c0_11] : memref<1x128xf32, #tpu.memory_space<vmem>>, vector<1x128xf32>
    %14 = vector.broadcast %13 : vector<1x128xf32> to vector<384x128xf32>
    %15 = arith.addf %12, %14 : vector<384x128xf32>
    %c0_12 = arith.constant 0 : index
    %c0_13 = arith.constant 0 : index
    %16 = vector.load %arg5[%c0_12, %c0_13] : memref<384x128xf32, #tpu.memory_space<vmem>>, vector<384x128xf32>
    tpu.vector_store %arg5[%c0_12, %c0_13], %15 {strides = array<i32>} : memref<384x128xf32, #tpu.memory_space<vmem>>, vector<384x128xf32>,
    return
  }
}

</mosaic_0001>

<llo_original>
// kernel: variational_encoder_forward.1
$region0: #{variational_encoder_forward.1}
  #allocation0 [shape = 'u32[]', space=smem, size = 0x4, offset = 0x4, fixed_abs, tag = 'smem constant byte address 0x4 - core index']
  #allocation1 [shape = 'u32[144,128]{1,0:T(1,128)}', space=vmem, size = 0x12000, scoped, tag = 'internal scratch']
  %s0 = inlined_call_operand.vmem [shape: bf16[384,384], index: 0, kind: input, shape index: {}]
  %s1 = inlined_call_operand.vmem [shape: bf16[384,128], index: 1, kind: input, shape index: {}]
  %s2 = inlined_call_operand.vmem [shape: f32[1,128], index: 2, kind: input, shape index: {}]
  %s3 = inlined_call_operand.vmem [shape: bf16[128,128], index: 3, kind: input, shape index: {}]
  %s4 = inlined_call_operand.vmem [shape: f32[1,128], index: 4, kind: input, shape index: {}]
  %s5 = inlined_call_operand.vmem [shape: f32[384,128], index: 5, kind: output, shape index: {}]
  %s6 = sld [smem:[#allocation0]]
  $region30: #{variational_encoder_forward.1} parent=0
    _
  %s8 = ssub.s32 1, %s6
  %s9 = scalar_select 0, %s8, %s6
  // Predicated region
  $region2: #{variational_encoder_forward.1} parent=0 // pred_check
    _
  $region3: #{variational_encoder_forward.1} parent=0 // pred_check_branch
    %11 = sbr.rel (0) target = $region5
  $region4: #{variational_encoder_forward.1} parent=0 // pred_region
    _
  $region5: #{variational_encoder_forward.1} parent=0 // pred_fallthru
    _
  // Predicated region
  $region6: #{variational_encoder_forward.1} parent=0 // pred_check
    _
  $region7: #{variational_encoder_forward.1} parent=0 // pred_check_branch
    %13 = sbr.rel (0) target = $region9
  $region8: #{variational_encoder_forward.1} parent=0 // pred_region
    _
  $region9: #{variational_encoder_forward.1} parent=0 // pred_fallthru
    _
  // Predicated region
  $region10: #{variational_encoder_forward.1} parent=0 // pred_check
    _
  $region11: #{variational_encoder_forward.1} parent=0 // pred_check_branch
    %15 = sbr.rel (0) target = $region13
  $region12: #{variational_encoder_forward.1} parent=0 // pred_region
    _
  $region13: #{variational_encoder_forward.1} parent=0 // pred_fallthru
    _
  // Predicated region
  $region14: #{variational_encoder_forward.1} parent=0 // pred_check
    _
  $region15: #{variational_encoder_forward.1} parent=0 // pred_check_branch
    %17 = sbr.rel (0) target = $region17
  $region16: #{variational_encoder_forward.1} parent=0 // pred_region
    _
  $region17: #{variational_encoder_forward.1} parent=0 // pred_fallthru
    _
  // Predicated region
  $region18: #{variational_encoder_forward.1} parent=0 // pred_check
    _
  $region19: #{variational_encoder_forward.1} parent=0 // pred_check_branch
    %19 = sbr.rel (0) target = $region21
  $region20: #{variational_encoder_forward.1} parent=0 // pred_region
    _
  $region21: #{variational_encoder_forward.1} parent=0 // pred_fallthru
    _
  %v21 = vld [vmem:[%s0] sm:$0xff]
  %v22 = vld [vmem:[%s0 + $0x8] sm:$0xf]
  %v23 = vld [vmem:[%s0 + $0xc] sm:$0xff]
  %v24 = vld [vmem:[%s0 + $0x14] sm:$0xf]
  %v25 = vld [vmem:[%s0 + $0x18] sm:$0xff]
  %v26 = vld [vmem:[%s0 + $0x20] sm:$0xf]
  %v27 = vld [vmem:[%s0 + $0x24] sm:$0xff]
  %v28 = vld [vmem:[%s0 + $0x2c] sm:$0xf]
  %v29 = vld [vmem:[%s0 + $0x30] sm:$0xff]
  %v30 = vld [vmem:[%s0 + $0x38] sm:$0xf]
  %v31 = vld [vmem:[%s0 + $0x3c] sm:$0xff]
  %v32 = vld [vmem:[%s0 + $0x44] sm:$0xf]
  %v33 = vld [vmem:[%s0 + $0x48] sm:$0xff]
  %v34 = vld [vmem:[%s0 + $0x50] sm:$0xf]
  %v35 = vld [vmem:[%s0 + $0x54] sm:$0xff]
  %v36 = vld [vmem:[%s0 + $0x5c] sm:$0xf]
  %v37 = vld [vmem:[%s0 + $0x60] sm:$0xff]
  %v38 = vld [vmem:[%s0 + $0x68] sm:$0xf]
  %v39 = vld [vmem:[%s0 + $0x6c] sm:$0xff]
  %v40 = vld [vmem:[%s0 + $0x74] sm:$0xf]
  %v41 = vld [vmem:[%s0 + $0x78] sm:$0xff]
  %v42 = vld [vmem:[%s0 + $0x80] sm:$0xf]
  %v43 = vld [vmem:[%s0 + $0x84] sm:$0xff]
  %v44 = vld [vmem:[%s0 + $0x8c] sm:$0xf]
  %v45 = vld [vmem:[%s0 + $0x90] sm:$0xff]
  %v46 = vld [vmem:[%s0 + $0x98] sm:$0xf]
  %v47 = vld [vmem:[%s0 + $0x9c] sm:$0xff]
  %v48 = vld [vmem:[%s0 + $0xa4] sm:$0xf]
  %v49 = vld [vmem:[%s0 + $0xa8] sm:$0xff]
  %v50 = vld [vmem:[%s0 + $0xb0] sm:$0xf]
  %v51 = vld [vmem:[%s0 + $0xb4] sm:$0xff]
  %v52 = vld [vmem:[%s0 + $0xbc] sm:$0xf]
  %v53 = vld [vmem:[%s0 + $0xc0] sm:$0xff]
  %v54 = vld [vmem:[%s0 + $0xc8] sm:$0xf]
  %v55 = vld [vmem:[%s0 + $0xcc] sm:$0xff]
  %v56 = vld [vmem:[%s0 + $0xd4] sm:$0xf]
  %v57 = vld [vmem:[%s0 + $0xd8] sm:$0xff]
  %v58 = vld [vmem:[%s0 + $0xe0] sm:$0xf]
  %v59 = vld [vmem:[%s0 + $0xe4] sm:$0xff]
  %v60 = vld [vmem:[%s0 + $0xec] sm:$0xf]
  %v61 = vld [vmem:[%s0 + $0xf0] sm:$0xff]
  %v62 = vld [vmem:[%s0 + $0xf8] sm:$0xf]
  %v63 = vld [vmem:[%s0 + $0xfc] sm:$0xff]
  %v64 = vld [vmem:[%s0 + $0x104] sm:$0xf]
  %v65 = vld [vmem:[%s0 + $0x108] sm:$0xff]
  %v66 = vld [vmem:[%s0 + $0x110] sm:$0xf]
  %v67 = vld [vmem:[%s0 + $0x114] sm:$0xff]
  %v68 = vld [vmem:[%s0 + $0x11c] sm:$0xf]
  %v69 = vld [vmem:[%s0 + $0x120] sm:$0xff]
  %v70 = vld [vmem:[%s0 + $0x128] sm:$0xf]
  %v71 = vld [vmem:[%s0 + $0x12c] sm:$0xff]
  %v72 = vld [vmem:[%s0 + $0x134] sm:$0xf]
  %v73 = vld [vmem:[%s0 + $0x138] sm:$0xff]
  %v74 = vld [vmem:[%s0 + $0x140] sm:$0xf]
  %v75 = vld [vmem:[%s0 + $0x144] sm:$0xff]
  %v76 = vld [vmem:[%s0 + $0x14c] sm:$0xf]
  %v77 = vld [vmem:[%s0 + $0x150] sm:$0xff]
  %v78 = vld [vmem:[%s0 + $0x158] sm:$0xf]
  %v79 = vld [vmem:[%s0 + $0x15c] sm:$0xff]
  %v80 = vld [vmem:[%s0 + $0x164] sm:$0xf]
  %v81 = vld [vmem:[%s0 + $0x168] sm:$0xff]
  %v82 = vld [vmem:[%s0 + $0x170] sm:$0xf]
  %v83 = vld [vmem:[%s0 + $0x174] sm:$0xff]
  %v84 = vld [vmem:[%s0 + $0x17c] sm:$0xf]
  %v85 = vld [vmem:[%s0 + $0x180] sm:$0xff]
  %v86 = vld [vmem:[%s0 + $0x188] sm:$0xf]
  %v87 = vld [vmem:[%s0 + $0x18c] sm:$0xff]
  %v88 = vld [vmem:[%s0 + $0x194] sm:$0xf]
  %v89 = vld [vmem:[%s0 + $0x198] sm:$0xff]
  %v90 = vld [vmem:[%s0 + $0x1a0] sm:$0xf]
  %v91 = vld [vmem:[%s0 + $0x1a4] sm:$0xff]
  %v92 = vld [vmem:[%s0 + $0x1ac] sm:$0xf]
  %v93 = vld [vmem:[%s0 + $0x1b0] sm:$0xff]
  %v94 = vld [vmem:[%s0 + $0x1b8] sm:$0xf]
  %v95 = vld [vmem:[%s0 + $0x1bc] sm:$0xff]
  %v96 = vld [vmem:[%s0 + $0x1c4] sm:$0xf]
  %v97 = vld [vmem:[%s0 + $0x1c8] sm:$0xff]
  %v98 = vld [vmem:[%s0 + $0x1d0] sm:$0xf]
  %v99 = vld [vmem:[%s0 + $0x1d4] sm:$0xff]
  %v100 = vld [vmem:[%s0 + $0x1dc] sm:$0xf]
  %v101 = vld [vmem:[%s0 + $0x1e0] sm:$0xff]
  %v102 = vld [vmem:[%s0 + $0x1e8] sm:$0xf]
  %v103 = vld [vmem:[%s0 + $0x1ec] sm:$0xff]
  %v104 = vld [vmem:[%s0 + $0x1f4] sm:$0xf]
  %v105 = vld [vmem:[%s0 + $0x1f8] sm:$0xff]
  %v106 = vld [vmem:[%s0 + $0x200] sm:$0xf]
  %v107 = vld [vmem:[%s0 + $0x204] sm:$0xff]
  %v108 = vld [vmem:[%s0 + $0x20c] sm:$0xf]
  %v109 = vld [vmem:[%s0 + $0x210] sm:$0xff]
  %v110 = vld [vmem:[%s0 + $0x218] sm:$0xf]
  %v111 = vld [vmem:[%s0 + $0x21c] sm:$0xff]
  %v112 = vld [vmem:[%s0 + $0x224] sm:$0xf]
  %v113 = vld [vmem:[%s0 + $0x228] sm:$0xff]
  %v114 = vld [vmem:[%s0 + $0x230] sm:$0xf]
  %v115 = vld [vmem:[%s0 + $0x234] sm:$0xff]
  %v116 = vld [vmem:[%s0 + $0x23c] sm:$0xf]
  %v117 = vld [vmem:[%s1] sm:$0xf]
  %v118 = vld [vmem:[%s1 + $0x4] sm:$0xf]
  %v119 = vld [vmem:[%s1 + $0x8] sm:$0xf]
  %v120 = vld [vmem:[%s1 + $0xc] sm:$0xf]
  %v121 = vld [vmem:[%s1 + $0x10] sm:$0xf]
  %v122 = vld [vmem:[%s1 + $0x14] sm:$0xf]
  %v123 = vld [vmem:[%s1 + $0x18] sm:$0xf]
  %v124 = vld [vmem:[%s1 + $0x1c] sm:$0xf]
  %v125 = vld [vmem:[%s1 + $0x20] sm:$0xf]
  %v126 = vld [vmem:[%s1 + $0x24] sm:$0xf]
  %v127 = vld [vmem:[%s1 + $0x28] sm:$0xf]
  %v128 = vld [vmem:[%s1 + $0x2c] sm:$0xf]
  %v129 = vld [vmem:[%s1 + $0x30] sm:$0xf]
  %v130 = vld [vmem:[%s1 + $0x34] sm:$0xf]
  %v131 = vld [vmem:[%s1 + $0x38] sm:$0xf]
  %v132 = vld [vmem:[%s1 + $0x3c] sm:$0xf]
  %v133 = vld [vmem:[%s1 + $0x40] sm:$0xf]
  %v134 = vld [vmem:[%s1 + $0x44] sm:$0xf]
  %v135 = vld [vmem:[%s1 + $0x48] sm:$0xf]
  %v136 = vld [vmem:[%s1 + $0x4c] sm:$0xf]
  %v137 = vld [vmem:[%s1 + $0x50] sm:$0xf]
  %v138 = vld [vmem:[%s1 + $0x54] sm:$0xf]
  %v139 = vld [vmem:[%s1 + $0x58] sm:$0xf]
  %v140 = vld [vmem:[%s1 + $0x5c] sm:$0xf]
  %v141 = vld [vmem:[%s1 + $0x60] sm:$0xf]
  %v142 = vld [vmem:[%s1 + $0x64] sm:$0xf]
  %v143 = vld [vmem:[%s1 + $0x68] sm:$0xf]
  %v144 = vld [vmem:[%s1 + $0x6c] sm:$0xf]
  %v145 = vld [vmem:[%s1 + $0x70] sm:$0xf]
  %v146 = vld [vmem:[%s1 + $0x74] sm:$0xf]
  %v147 = vld [vmem:[%s1 + $0x78] sm:$0xf]
  %v148 = vld [vmem:[%s1 + $0x7c] sm:$0xf]
  %v149 = vld [vmem:[%s1 + $0x80] sm:$0xf]
  %v150 = vld [vmem:[%s1 + $0x84] sm:$0xf]
  %v151 = vld [vmem:[%s1 + $0x88] sm:$0xf]
  %v152 = vld [vmem:[%s1 + $0x8c] sm:$0xf]
  %v153 = vld [vmem:[%s1 + $0x90] sm:$0xf]
  %v154 = vld [vmem:[%s1 + $0x94] sm:$0xf]
  %v155 = vld [vmem:[%s1 + $0x98] sm:$0xf]
  %v156 = vld [vmem:[%s1 + $0x9c] sm:$0xf]
  %v157 = vld [vmem:[%s1 + $0xa0] sm:$0xf]
  %v158 = vld [vmem:[%s1 + $0xa4] sm:$0xf]
  %v159 = vld [vmem:[%s1 + $0xa8] sm:$0xf]
  %v160 = vld [vmem:[%s1 + $0xac] sm:$0xf]
  %v161 = vld [vmem:[%s1 + $0xb0] sm:$0xf]
  %v162 = vld [vmem:[%s1 + $0xb4] sm:$0xf]
  %v163 = vld [vmem:[%s1 + $0xb8] sm:$0xf]
  %v164 = vld [vmem:[%s1 + $0xbc] sm:$0xf]
  %v165 = vld [vmem:[%s2] sm:$0x1]
  %v167 = vlaneseq
  %v168 = vshrl.u32 %v167, 7
  %v169 = vsub.s32 0, %v168
  %v170 = vrot.slane %v165, %v169
  %v268 = vunpack.c.l.b16 %v21
  %v269 = vunpack.c.h.b16 %v21
  %v270 = vunpack.c.l.b16 %v22
  %v271 = vunpack.c.l.b16 %v23
  %v272 = vunpack.c.h.b16 %v23
  %v273 = vunpack.c.l.b16 %v24
  %v274 = vunpack.c.l.b16 %v25
  %v275 = vunpack.c.h.b16 %v25
  %v276 = vunpack.c.l.b16 %v26
  %v277 = vunpack.c.l.b16 %v27
  %v278 = vunpack.c.h.b16 %v27
  %v279 = vunpack.c.l.b16 %v28
  %v280 = vunpack.c.l.b16 %v29
  %v281 = vunpack.c.h.b16 %v29
  %v282 = vunpack.c.l.b16 %v30
  %v283 = vunpack.c.l.b16 %v31
  %v284 = vunpack.c.h.b16 %v31
  %v285 = vunpack.c.l.b16 %v32
  %v286 = vunpack.c.l.b16 %v33
  %v287 = vunpack.c.h.b16 %v33
  %v288 = vunpack.c.l.b16 %v34
  %v289 = vunpack.c.l.b16 %v35
  %v290 = vunpack.c.h.b16 %v35
  %v291 = vunpack.c.l.b16 %v36
  %v292 = vunpack.c.l.b16 %v37
  %v293 = vunpack.c.h.b16 %v37
  %v294 = vunpack.c.l.b16 %v38
  %v295 = vunpack.c.l.b16 %v39
  %v296 = vunpack.c.h.b16 %v39
  %v297 = vunpack.c.l.b16 %v40
  %v298 = vunpack.c.l.b16 %v41
  %v299 = vunpack.c.h.b16 %v41
  %v300 = vunpack.c.l.b16 %v42
  %v301 = vunpack.c.l.b16 %v43
  %v302 = vunpack.c.h.b16 %v43
  %v303 = vunpack.c.l.b16 %v44
  %v304 = vunpack.c.l.b16 %v45
  %v305 = vunpack.c.h.b16 %v45
  %v306 = vunpack.c.l.b16 %v46
  %v307 = vunpack.c.l.b16 %v47
  %v308 = vunpack.c.h.b16 %v47
  %v309 = vunpack.c.l.b16 %v48
  %v310 = vunpack.c.l.b16 %v49
  %v311 = vunpack.c.h.b16 %v49
  %v312 = vunpack.c.l.b16 %v50
  %v313 = vunpack.c.l.b16 %v51
  %v314 = vunpack.c.h.b16 %v51
  %v315 = vunpack.c.l.b16 %v52
  %v316 = vunpack.c.l.b16 %v53
  %v317 = vunpack.c.h.b16 %v53
  %v318 = vunpack.c.l.b16 %v54
  %v319 = vunpack.c.l.b16 %v55
  %v320 = vunpack.c.h.b16 %v55
  %v321 = vunpack.c.l.b16 %v56
  %v322 = vunpack.c.l.b16 %v57
  %v323 = vunpack.c.h.b16 %v57
  %v324 = vunpack.c.l.b16 %v58
  %v325 = vunpack.c.l.b16 %v59
  %v326 = vunpack.c.h.b16 %v59
  %v327 = vunpack.c.l.b16 %v60
  %v328 = vunpack.c.l.b16 %v61
  %v329 = vunpack.c.h.b16 %v61
  %v330 = vunpack.c.l.b16 %v62
  %v331 = vunpack.c.l.b16 %v63
  %v332 = vunpack.c.h.b16 %v63
  %v333 = vunpack.c.l.b16 %v64
  %v334 = vunpack.c.l.b16 %v65
  %v335 = vunpack.c.h.b16 %v65
  %v336 = vunpack.c.l.b16 %v66
  %v337 = vunpack.c.l.b16 %v67
  %v338 = vunpack.c.h.b16 %v67
  %v339 = vunpack.c.l.b16 %v68
  %v340 = vunpack.c.l.b16 %v69
  %v341 = vunpack.c.h.b16 %v69
  %v342 = vunpack.c.l.b16 %v70
  %v343 = vunpack.c.l.b16 %v71
  %v344 = vunpack.c.h.b16 %v71
  %v345 = vunpack.c.l.b16 %v72
  %v346 = vunpack.c.l.b16 %v73
  %v347 = vunpack.c.h.b16 %v73
  %v348 = vunpack.c.l.b16 %v74
  %v349 = vunpack.c.l.b16 %v75
  %v350 = vunpack.c.h.b16 %v75
  %v351 = vunpack.c.l.b16 %v76
  %v352 = vunpack.c.l.b16 %v77
  %v353 = vunpack.c.h.b16 %v77
  %v354 = vunpack.c.l.b16 %v78
  %v355 = vunpack.c.l.b16 %v79
  %v356 = vunpack.c.h.b16 %v79
  %v357 = vunpack.c.l.b16 %v80
  %v358 = vunpack.c.l.b16 %v81
  %v359 = vunpack.c.h.b16 %v81
  %v360 = vunpack.c.l.b16 %v82
  %v361 = vunpack.c.l.b16 %v83
  %v362 = vunpack.c.h.b16 %v83
  %v363 = vunpack.c.l.b16 %v84
  %v364 = vunpack.c.l.b16 %v85
  %v365 = vunpack.c.h.b16 %v85
  %v366 = vunpack.c.l.b16 %v86
  %v367 = vunpack.c.l.b16 %v87
  %v368 = vunpack.c.h.b16 %v87
  %v369 = vunpack.c.l.b16 %v88
  %v370 = vunpack.c.l.b16 %v89
  %v371 = vunpack.c.h.b16 %v89
  %v372 = vunpack.c.l.b16 %v90
  %v373 = vunpack.c.l.b16 %v91
  %v374 = vunpack.c.h.b16 %v91
  %v375 = vunpack.c.l.b16 %v92
  %v376 = vunpack.c.l.b16 %v93
  %v377 = vunpack.c.h.b16 %v93
  %v378 = vunpack.c.l.b16 %v94
  %v379 = vunpack.c.l.b16 %v95
  %v380 = vunpack.c.h.b16 %v95
  %v381 = vunpack.c.l.b16 %v96
  %v382 = vunpack.c.l.b16 %v97
  %v383 = vunpack.c.h.b16 %v97
  %v384 = vunpack.c.l.b16 %v98
  %v385 = vunpack.c.l.b16 %v99
  %v386 = vunpack.c.h.b16 %v99
  %v387 = vunpack.c.l.b16 %v100
  %v388 = vunpack.c.l.b16 %v101
  %v389 = vunpack.c.h.b16 %v101
  %v390 = vunpack.c.l.b16 %v102
  %v391 = vunpack.c.l.b16 %v103
  %v392 = vunpack.c.h.b16 %v103
  %v393 = vunpack.c.l.b16 %v104
  %v394 = vunpack.c.l.b16 %v105
  %v395 = vunpack.c.h.b16 %v105
  %v396 = vunpack.c.l.b16 %v106
  %v397 = vunpack.c.l.b16 %v107
  %v398 = vunpack.c.h.b16 %v107
  %v399 = vunpack.c.l.b16 %v108
  %v400 = vunpack.c.l.b16 %v109
  %v401 = vunpack.c.h.b16 %v109
  %v402 = vunpack.c.l.b16 %v110
  %v403 = vunpack.c.l.b16 %v111
  %v404 = vunpack.c.h.b16 %v111
  %v405 = vunpack.c.l.b16 %v112
  %v406 = vunpack.c.l.b16 %v113
  %v407 = vunpack.c.h.b16 %v113
  %v408 = vunpack.c.l.b16 %v114
  %v409 = vunpack.c.l.b16 %v115
  %v410 = vunpack.c.h.b16 %v115
  %v411 = vunpack.c.l.b16 %v116
  %v412 = vpack.c.b16 %v271, %v268
  %v413 = vpack.c.b16 %v272, %v269
  %v414 = vpack.c.b16 %v273, %v270
  %v415 = vpack.c.b16 %v277, %v274
  %v416 = vpack.c.b16 %v278, %v275
  %v417 = vpack.c.b16 %v279, %v276
  %v418 = vpack.c.b16 %v283, %v280
  %v419 = vpack.c.b16 %v284, %v281
  %v420 = vpack.c.b16 %v285, %v282
  %v421 = vpack.c.b16 %v289, %v286
  %v422 = vpack.c.b16 %v290, %v287
  %v423 = vpack.c.b16 %v291, %v288
  %v424 = vpack.c.b16 %v295, %v292
  %v425 = vpack.c.b16 %v296, %v293
  %v426 = vpack.c.b16 %v297, %v294
  %v427 = vpack.c.b16 %v301, %v298
  %v428 = vpack.c.b16 %v302, %v299
  %v429 = vpack.c.b16 %v303, %v300
  %v430 = vpack.c.b16 %v307, %v304
  %v431 = vpack.c.b16 %v308, %v305
  %v432 = vpack.c.b16 %v309, %v306
  %v433 = vpack.c.b16 %v313, %v310
  %v434 = vpack.c.b16 %v314, %v311
  %v435 = vpack.c.b16 %v315, %v312
  %v436 = vpack.c.b16 %v319, %v316
  %v437 = vpack.c.b16 %v320, %v317
  %v438 = vpack.c.b16 %v321, %v318
  %v439 = vpack.c.b16 %v325, %v322
  %v440 = vpack.c.b16 %v326, %v323
  %v441 = vpack.c.b16 %v327, %v324
  %v442 = vpack.c.b16 %v331, %v328
  %v443 = vpack.c.b16 %v332, %v329
  %v444 = vpack.c.b16 %v333, %v330
  %v445 = vpack.c.b16 %v337, %v334
  %v446 = vpack.c.b16 %v338, %v335
  %v447 = vpack.c.b16 %v339, %v336
  %v448 = vpack.c.b16 %v343, %v340
  %v449 = vpack.c.b16 %v344, %v341
  %v450 = vpack.c.b16 %v345, %v342
  %v451 = vpack.c.b16 %v349, %v346
  %v452 = vpack.c.b16 %v350, %v347
  %v453 = vpack.c.b16 %v351, %v348
  %v454 = vpack.c.b16 %v355, %v352
  %v455 = vpack.c.b16 %v356, %v353
  %v456 = vpack.c.b16 %v357, %v354
  %v457 = vpack.c.b16 %v361, %v358
  %v458 = vpack.c.b16 %v362, %v359
  %v459 = vpack.c.b16 %v363, %v360
  %v460 = vpack.c.b16 %v367, %v364
  %v461 = vpack.c.b16 %v368, %v365
  %v462 = vpack.c.b16 %v369, %v366
  %v463 = vpack.c.b16 %v373, %v370
  %v464 = vpack.c.b16 %v374, %v371
  %v465 = vpack.c.b16 %v375, %v372
  %v466 = vpack.c.b16 %v379, %v376
  %v467 = vpack.c.b16 %v380, %v377
  %v468 = vpack.c.b16 %v381, %v378
  %v469 = vpack.c.b16 %v385, %v382
  %v470 = vpack.c.b16 %v386, %v383
  %v471 = vpack.c.b16 %v387, %v384
  %v472 = vpack.c.b16 %v391, %v388
  %v473 = vpack.c.b16 %v392, %v389
  %v474 = vpack.c.b16 %v393, %v390
  %v475 = vpack.c.b16 %v397, %v394
  %v476 = vpack.c.b16 %v398, %v395
  %v477 = vpack.c.b16 %v399, %v396
  %v478 = vpack.c.b16 %v403, %v400
  %v479 = vpack.c.b16 %v404, %v401
  %v480 = vpack.c.b16 %v405, %v402
  %v481 = vpack.c.b16 %v409, %v406
  %v482 = vpack.c.b16 %v410, %v407
  %v483 = vpack.c.b16 %v411, %v408
  %v604 = vunpack.c.l.b16 %v117
  %v605 = vunpack.c.l.b16 %v118
  %v606 = vunpack.c.l.b16 %v119
  %v607 = vunpack.c.l.b16 %v120
  %v608 = vunpack.c.l.b16 %v121
  %v609 = vunpack.c.l.b16 %v122
  %v610 = vunpack.c.l.b16 %v123
  %v611 = vunpack.c.l.b16 %v124
  %v612 = vunpack.c.l.b16 %v125
  %v613 = vunpack.c.l.b16 %v126
  %v614 = vunpack.c.l.b16 %v127
  %v615 = vunpack.c.l.b16 %v128
  %v616 = vunpack.c.l.b16 %v129
  %v617 = vunpack.c.l.b16 %v130
  %v618 = vunpack.c.l.b16 %v131
  %v619 = vunpack.c.l.b16 %v132
  %v620 = vunpack.c.l.b16 %v133
  %v621 = vunpack.c.l.b16 %v134
  %v622 = vunpack.c.l.b16 %v135
  %v623 = vunpack.c.l.b16 %v136
  %v624 = vunpack.c.l.b16 %v137
  %v625 = vunpack.c.l.b16 %v138
  %v626 = vunpack.c.l.b16 %v139
  %v627 = vunpack.c.l.b16 %v140
  %v628 = vunpack.c.l.b16 %v141
  %v629 = vunpack.c.l.b16 %v142
  %v630 = vunpack.c.l.b16 %v143
  %v631 = vunpack.c.l.b16 %v144
  %v632 = vunpack.c.l.b16 %v145
  %v633 = vunpack.c.l.b16 %v146
  %v634 = vunpack.c.l.b16 %v147
  %v635 = vunpack.c.l.b16 %v148
  %v636 = vunpack.c.l.b16 %v149
  %v637 = vunpack.c.l.b16 %v150
  %v638 = vunpack.c.l.b16 %v151
  %v639 = vunpack.c.l.b16 %v152
  %v640 = vunpack.c.l.b16 %v153
  %v641 = vunpack.c.l.b16 %v154
  %v642 = vunpack.c.l.b16 %v155
  %v643 = vunpack.c.l.b16 %v156
  %v644 = vunpack.c.l.b16 %v157
  %v645 = vunpack.c.l.b16 %v158
  %v646 = vunpack.c.l.b16 %v159
  %v647 = vunpack.c.l.b16 %v160
  %v648 = vunpack.c.l.b16 %v161
  %v649 = vunpack.c.l.b16 %v162
  %v650 = vunpack.c.l.b16 %v163
  %v651 = vunpack.c.l.b16 %v164
  %v652 = vpack.c.b16 %v605, %v604
  %v653 = vpack.c.b16 %v607, %v606
  %v654 = vpack.c.b16 %v609, %v608
  %v655 = vpack.c.b16 %v611, %v610
  %v656 = vpack.c.b16 %v613, %v612
  %v657 = vpack.c.b16 %v615, %v614
  %v658 = vpack.c.b16 %v617, %v616
  %v659 = vpack.c.b16 %v619, %v618
  %v660 = vpack.c.b16 %v621, %v620
  %v661 = vpack.c.b16 %v623, %v622
  %v662 = vpack.c.b16 %v625, %v624
  %v663 = vpack.c.b16 %v627, %v626
  %v664 = vpack.c.b16 %v629, %v628
  %v665 = vpack.c.b16 %v631, %v630
  %v666 = vpack.c.b16 %v633, %v632
  %v667 = vpack.c.b16 %v635, %v634
  %v668 = vpack.c.b16 %v637, %v636
  %v669 = vpack.c.b16 %v639, %v638
  %v670 = vpack.c.b16 %v641, %v640
  %v671 = vpack.c.b16 %v643, %v642
  %v672 = vpack.c.b16 %v645, %v644
  %v673 = vpack.c.b16 %v647, %v646
  %v674 = vpack.c.b16 %v649, %v648
  %v675 = vpack.c.b16 %v651, %v650
  %700 = vmatprep.subr.bf16.mxu0 0
  %701 = vmatpush1.bf16.msra.mxu0 %v659
  %702 = vmatprep.subr.bf16.mxu0 0
  %703 = vmatpush1.bf16.msra.mxu0 %v658
  %704 = vmatprep.subr.bf16.mxu0 0
  %705 = vmatpush1.bf16.msra.mxu0 %v657
  %706 = vmatprep.subr.bf16.mxu0 0
  %707 = vmatpush1.bf16.msra.mxu0 %v656
  %708 = vmatprep.subr.bf16.mxu0 0
  %709 = vmatpush1.bf16.msra.mxu0 %v655
  %710 = vmatprep.subr.bf16.mxu0 0
  %711 = vmatpush1.bf16.msra.mxu0 %v654
  %712 = vmatprep.subr.bf16.mxu0 0
  %713 = vmatpush1.bf16.msra.mxu0 %v653
  %714 = vmatprep.subr.bf16.mxu0 0
  %715 = vmatpush1.bf16.msra.mxu0 %v652
  %716 = vmatprep.subr.bf16.mxu0 0
  %717 = vmatpush2.bf16.msra.mxu0 %v667
  %718 = vmatprep.subr.bf16.mxu0 0
  %719 = vmatpush2.bf16.msra.mxu0 %v666
  %720 = vmatprep.subr.bf16.mxu0 0
  %721 = vmatpush2.bf16.msra.mxu0 %v665
  %722 = vmatprep.subr.bf16.mxu0 0
  %723 = vmatpush2.bf16.msra.mxu0 %v664
  %724 = vmatprep.subr.bf16.mxu0 0
  %725 = vmatpush2.bf16.msra.mxu0 %v663
  %726 = vmatprep.subr.bf16.mxu0 0
  %727 = vmatpush2.bf16.msra.mxu0 %v662
  %728 = vmatprep.subr.bf16.mxu0 0
  %729 = vmatpush2.bf16.msra.mxu0 %v661
  %730 = vmatprep.subr.bf16.mxu0 0
  %731 = vmatpush2.bf16.msra.mxu0 %v660
  %732 = vmatprep.mubr.bf16.mxu0 %v413
  %733 = vmatmul.mubr.bf16.gmra.mxu0 %v412
  %v734 = vpop.f32.mrf.mxu0
  %v735 = vadd.f32 %v170, %v734
  %v736 = vpop.f32.mrf.mxu0
  %v737 = vpop.f32.mrf.mxu0
  %v738 = vadd.f32 %v170, %v737
  %v739 = vpop.f32.mrf.mxu0
  %740 = vmatprep.mubr.bf16.mxu0 %v416
  %741 = vmatmul.mubr.bf16.gmra.mxu0 %v415
  %v742 = vpop.f32.mrf.mxu0
  %v743 = vadd.f32 %v170, %v742
  %v744 = vpop.f32.mrf.mxu0
  %v745 = vpop.f32.mrf.mxu0
  %v746 = vadd.f32 %v170, %v745
  %v747 = vpop.f32.mrf.mxu0
  %748 = vmatprep.mubr.bf16.mxu0 %v419
  %749 = vmatmul.mubr.bf16.gmra.mxu0 %v418
  %v750 = vpop.f32.mrf.mxu0
  %v751 = vadd.f32 %v170, %v750
  %v752 = vpop.f32.mrf.mxu0
  %v753 = vpop.f32.mrf.mxu0
  %v754 = vadd.f32 %v170, %v753
  %v755 = vpop.f32.mrf.mxu0
  %756 = vmatprep.mubr.bf16.mxu0 %v422
  %757 = vmatmul.mubr.bf16.gmra.mxu0 %v421
  %v758 = vpop.f32.mrf.mxu0
  %v759 = vadd.f32 %v170, %v758
  %v760 = vpop.f32.mrf.mxu0
  %v761 = vpop.f32.mrf.mxu0
  %v762 = vadd.f32 %v170, %v761
  %v763 = vpop.f32.mrf.mxu0
  %764 = vmatprep.mubr.bf16.mxu0 %v425
  %765 = vmatmul.mubr.bf16.gmra.mxu0 %v424
  %v766 = vpop.f32.mrf.mxu0
  %v767 = vadd.f32 %v170, %v766
  %v768 = vpop.f32.mrf.mxu0
  %v769 = vpop.f32.mrf.mxu0
  %v770 = vadd.f32 %v170, %v769
  %v771 = vpop.f32.mrf.mxu0
  %772 = vmatprep.mubr.bf16.mxu0 %v428
  %773 = vmatmul.mubr.bf16.gmra.mxu0 %v427
  %v774 = vpop.f32.mrf.mxu0
  %v775 = vadd.f32 %v170, %v774
  %v776 = vpop.f32.mrf.mxu0
  %v777 = vpop.f32.mrf.mxu0
  %v778 = vadd.f32 %v170, %v777
  %v779 = vpop.f32.mrf.mxu0
  %780 = vmatprep.mubr.bf16.mxu0 %v431
  %781 = vmatmul.mubr.bf16.gmra.mxu0 %v430
  %v782 = vpop.f32.mrf.mxu0
  %v783 = vadd.f32 %v170, %v782
  %v784 = vpop.f32.mrf.mxu0
  %v785 = vpop.f32.mrf.mxu0
  %v786 = vadd.f32 %v170, %v785
  %v787 = vpop.f32.mrf.mxu0
  %788 = vmatprep.mubr.bf16.mxu0 %v434
  %789 = vmatmul.mubr.bf16.gmra.mxu0 %v433
  %v790 = vpop.f32.mrf.mxu0
  %v791 = vadd.f32 %v170, %v790
  %v792 = vpop.f32.mrf.mxu0
  %v793 = vpop.f32.mrf.mxu0
  %v794 = vadd.f32 %v170, %v793
  %v795 = vpop.f32.mrf.mxu0
  %796 = vmatprep.mubr.bf16.mxu0 %v437
  %797 = vmatmul.mubr.bf16.gmra.mxu0 %v436
  %v798 = vpop.f32.mrf.mxu0
  %v799 = vadd.f32 %v170, %v798
  %v800 = vpop.f32.mrf.mxu0
  %v801 = vpop.f32.mrf.mxu0
  %v802 = vadd.f32 %v170, %v801
  %v803 = vpop.f32.mrf.mxu0
  %804 = vmatprep.mubr.bf16.mxu0 %v440
  %805 = vmatmul.mubr.bf16.gmra.mxu0 %v439
  %v806 = vpop.f32.mrf.mxu0
  %v807 = vadd.f32 %v170, %v806
  %v808 = vpop.f32.mrf.mxu0
  %v809 = vpop.f32.mrf.mxu0
  %v810 = vadd.f32 %v170, %v809
  %v811 = vpop.f32.mrf.mxu0
  %812 = vmatprep.mubr.bf16.mxu0 %v443
  %813 = vmatmul.mubr.bf16.gmra.mxu0 %v442
  %v814 = vpop.f32.mrf.mxu0
  %v815 = vadd.f32 %v170, %v814
  %v816 = vpop.f32.mrf.mxu0
  %v817 = vpop.f32.mrf.mxu0
  %v818 = vadd.f32 %v170, %v817
  %v819 = vpop.f32.mrf.mxu0
  %820 = vmatprep.mubr.bf16.mxu0 %v446
  %821 = vmatmul.mubr.bf16.gmra.mxu0 %v445
  %v822 = vpop.f32.mrf.mxu0
  %v823 = vadd.f32 %v170, %v822
  %v824 = vpop.f32.mrf.mxu0
  %v825 = vpop.f32.mrf.mxu0
  %v826 = vadd.f32 %v170, %v825
  %v827 = vpop.f32.mrf.mxu0
  %828 = vmatprep.mubr.bf16.mxu0 %v449
  %829 = vmatmul.mubr.bf16.gmra.mxu0 %v448
  %v830 = vpop.f32.mrf.mxu0
  %v831 = vadd.f32 %v170, %v830
  %v832 = vpop.f32.mrf.mxu0
  %v833 = vpop.f32.mrf.mxu0
  %v834 = vadd.f32 %v170, %v833
  %v835 = vpop.f32.mrf.mxu0
  %836 = vmatprep.mubr.bf16.mxu0 %v452
  %837 = vmatmul.mubr.bf16.gmra.mxu0 %v451
  %v838 = vpop.f32.mrf.mxu0
  %v839 = vadd.f32 %v170, %v838
  %v840 = vpop.f32.mrf.mxu0
  %v841 = vpop.f32.mrf.mxu0
  %v842 = vadd.f32 %v170, %v841
  %v843 = vpop.f32.mrf.mxu0
  %844 = vmatprep.mubr.bf16.mxu0 %v455
  %845 = vmatmul.mubr.bf16.gmra.mxu0 %v454
  %v846 = vpop.f32.mrf.mxu0
  %v847 = vadd.f32 %v170, %v846
  %v848 = vpop.f32.mrf.mxu0
  %v849 = vpop.f32.mrf.mxu0
  %v850 = vadd.f32 %v170, %v849
  %v851 = vpop.f32.mrf.mxu0
  %852 = vmatprep.mubr.bf16.mxu0 %v458
  %853 = vmatmul.mubr.bf16.gmra.mxu0 %v457
  %v854 = vpop.f32.mrf.mxu0
  %v855 = vadd.f32 %v170, %v854
  %v856 = vpop.f32.mrf.mxu0
  %v857 = vpop.f32.mrf.mxu0
  %v858 = vadd.f32 %v170, %v857
  %v859 = vpop.f32.mrf.mxu0
  %860 = vmatprep.mubr.bf16.mxu0 %v461
  %861 = vmatmul.mubr.bf16.gmra.mxu0 %v460
  %v862 = vpop.f32.mrf.mxu0
  %v863 = vadd.f32 %v170, %v862
  %v864 = vpop.f32.mrf.mxu0
  %v865 = vpop.f32.mrf.mxu0
  %v866 = vadd.f32 %v170, %v865
  %v867 = vpop.f32.mrf.mxu0
  %868 = vmatprep.mubr.bf16.mxu0 %v464
  %869 = vmatmul.mubr.bf16.gmra.mxu0 %v463
  %v870 = vpop.f32.mrf.mxu0
  %v871 = vadd.f32 %v170, %v870
  %v872 = vpop.f32.mrf.mxu0
  %v873 = vpop.f32.mrf.mxu0
  %v874 = vadd.f32 %v170, %v873
  %v875 = vpop.f32.mrf.mxu0
  %876 = vmatprep.mubr.bf16.mxu0 %v467
  %877 = vmatmul.mubr.bf16.gmra.mxu0 %v466
  %v878 = vpop.f32.mrf.mxu0
  %v879 = vadd.f32 %v170, %v878
  %v880 = vpop.f32.mrf.mxu0
  %v881 = vpop.f32.mrf.mxu0
  %v882 = vadd.f32 %v170, %v881
  %v883 = vpop.f32.mrf.mxu0
  %884 = vmatprep.mubr.bf16.mxu0 %v470
  %885 = vmatmul.mubr.bf16.gmra.mxu0 %v469
  %v886 = vpop.f32.mrf.mxu0
  %v887 = vadd.f32 %v170, %v886
  %v888 = vpop.f32.mrf.mxu0
  %v889 = vpop.f32.mrf.mxu0
  %v890 = vadd.f32 %v170, %v889
  %v891 = vpop.f32.mrf.mxu0
  %892 = vmatprep.mubr.bf16.mxu0 %v473
  %893 = vmatmul.mubr.bf16.gmra.mxu0 %v472
  %v894 = vpop.f32.mrf.mxu0
  %v895 = vadd.f32 %v170, %v894
  %v896 = vpop.f32.mrf.mxu0
  %v897 = vpop.f32.mrf.mxu0
  %v898 = vadd.f32 %v170, %v897
  %v899 = vpop.f32.mrf.mxu0
  %900 = vmatprep.mubr.bf16.mxu0 %v476
  %901 = vmatmul.mubr.bf16.gmra.mxu0 %v475
  %v902 = vpop.f32.mrf.mxu0
  %v903 = vadd.f32 %v170, %v902
  %v904 = vpop.f32.mrf.mxu0
  %v905 = vpop.f32.mrf.mxu0
  %v906 = vadd.f32 %v170, %v905
  %v907 = vpop.f32.mrf.mxu0
  %908 = vmatprep.mubr.bf16.mxu0 %v479
  %909 = vmatmul.mubr.bf16.gmra.mxu0 %v478
  %v910 = vpop.f32.mrf.mxu0
  %v911 = vadd.f32 %v170, %v910
  %v912 = vpop.f32.mrf.mxu0
  %v913 = vpop.f32.mrf.mxu0
  %v914 = vadd.f32 %v170, %v913
  %v915 = vpop.f32.mrf.mxu0
  %916 = vmatprep.mubr.bf16.mxu0 %v482
  %917 = vmatmul.mubr.bf16.gmra.mxu0 %v481
  %v918 = vpop.f32.mrf.mxu0
  %v919 = vadd.f32 %v170, %v918
  %v920 = vpop.f32.mrf.mxu0
  %v921 = vpop.f32.mrf.mxu0
  %v922 = vadd.f32 %v170, %v921
  %v923 = vpop.f32.mrf.mxu0
  %924 = vdwg.mxu0
  %925 = vmatprep.subr.bf16.mxu0 0
  %926 = vmatpush1.bf16.msra.mxu0 %v675
  %927 = vmatprep.subr.bf16.mxu0 0
  %928 = vmatpush1.bf16.msra.mxu0 %v674
  %929 = vmatprep.subr.bf16.mxu0 0
  %930 = vmatpush1.bf16.msra.mxu0 %v673
  %931 = vmatprep.subr.bf16.mxu0 0
  %932 = vmatpush1.bf16.msra.mxu0 %v672
  %933 = vmatprep.subr.bf16.mxu0 0
  %934 = vmatpush1.bf16.msra.mxu0 %v671
  %935 = vmatprep.subr.bf16.mxu0 0
  %936 = vmatpush1.bf16.msra.mxu0 %v670
  %937 = vmatprep.subr.bf16.mxu0 0
  %938 = vmatpush1.bf16.msra.mxu0 %v669
  %939 = vmatprep.subr.bf16.mxu0 0
  %940 = vmatpush1.bf16.msra.mxu0 %v668
  %941 = vmatprep.subr.bf16.mxu0 0
  %942 = vmatpush2.bf16.msra.mxu0 0
  %943 = vmatprep.subr.bf16.mxu0 0
  %944 = vmatpush2.bf16.msra.mxu0 0
  %945 = vmatprep.subr.bf16.mxu0 0
  %946 = vmatpush2.bf16.msra.mxu0 0
  %947 = vmatprep.subr.bf16.mxu0 0
  %948 = vmatpush2.bf16.msra.mxu0 0
  %949 = vmatprep.subr.bf16.mxu0 0
  %950 = vmatpush2.bf16.msra.mxu0 0
  %951 = vmatprep.subr.bf16.mxu0 0
  %952 = vmatpush2.bf16.msra.mxu0 0
  %953 = vmatprep.subr.bf16.mxu0 0
  %954 = vmatpush2.bf16.msra.mxu0 0
  %955 = vmatprep.subr.bf16.mxu0 0
  %956 = vmatpush2.bf16.msra.mxu0 0
  %957 = vmatprep.mubr.bf16.mxu0 0
  %958 = vmatmul.mubr.bf16.gmra.mxu0 %v414
  %v959 = vpop.f32.mrf.mxu0
  %v960 = vadd.f32 %v735, %v959
  %v961 = vpop.f32.mrf.mxu0
  %v962 = vpop.f32.mrf.mxu0
  %v963 = vadd.f32 %v738, %v962
  %v964 = vpop.f32.mrf.mxu0
  %965 = vmatprep.mubr.bf16.mxu0 0
  %966 = vmatmul.mubr.bf16.gmra.mxu0 %v417
  %v967 = vpop.f32.mrf.mxu0
  %v968 = vadd.f32 %v743, %v967
  %v969 = vpop.f32.mrf.mxu0
  %v970 = vpop.f32.mrf.mxu0
  %v971 = vadd.f32 %v746, %v970
  %v972 = vpop.f32.mrf.mxu0
  %973 = vmatprep.mubr.bf16.mxu0 0
  %974 = vmatmul.mubr.bf16.gmra.mxu0 %v420
  %v975 = vpop.f32.mrf.mxu0
  %v976 = vadd.f32 %v751, %v975
  %v977 = vpop.f32.mrf.mxu0
  %v978 = vpop.f32.mrf.mxu0
  %v979 = vadd.f32 %v754, %v978
  %v980 = vpop.f32.mrf.mxu0
  %981 = vmatprep.mubr.bf16.mxu0 0
  %982 = vmatmul.mubr.bf16.gmra.mxu0 %v423
  %v983 = vpop.f32.mrf.mxu0
  %v984 = vadd.f32 %v759, %v983
  %v985 = vpop.f32.mrf.mxu0
  %v986 = vpop.f32.mrf.mxu0
  %v987 = vadd.f32 %v762, %v986
  %v988 = vpop.f32.mrf.mxu0
  %989 = vmatprep.mubr.bf16.mxu0 0
  %990 = vmatmul.mubr.bf16.gmra.mxu0 %v426
  %v991 = vpop.f32.mrf.mxu0
  %v992 = vadd.f32 %v767, %v991
  %v993 = vpop.f32.mrf.mxu0
  %v994 = vpop.f32.mrf.mxu0
  %v995 = vadd.f32 %v770, %v994
  %v996 = vpop.f32.mrf.mxu0
  %997 = vmatprep.mubr.bf16.mxu0 0
  %998 = vmatmul.mubr.bf16.gmra.mxu0 %v429
  %v999 = vpop.f32.mrf.mxu0
  %v1000 = vadd.f32 %v775, %v999
  %v1001 = vpop.f32.mrf.mxu0
  %v1002 = vpop.f32.mrf.mxu0
  %v1003 = vadd.f32 %v778, %v1002
  %v1004 = vpop.f32.mrf.mxu0
  %1005 = vmatprep.mubr.bf16.mxu0 0
  %1006 = vmatmul.mubr.bf16.gmra.mxu0 %v432
  %v1007 = vpop.f32.mrf.mxu0
  %v1008 = vadd.f32 %v783, %v1007
  %v1009 = vpop.f32.mrf.mxu0
  %v1010 = vpop.f32.mrf.mxu0
  %v1011 = vadd.f32 %v786, %v1010
  %v1012 = vpop.f32.mrf.mxu0
  %1013 = vmatprep.mubr.bf16.mxu0 0
  %1014 = vmatmul.mubr.bf16.gmra.mxu0 %v435
  %v1015 = vpop.f32.mrf.mxu0
  %v1016 = vadd.f32 %v791, %v1015
  %v1017 = vpop.f32.mrf.mxu0
  %v1018 = vpop.f32.mrf.mxu0
  %v1019 = vadd.f32 %v794, %v1018
  %v1020 = vpop.f32.mrf.mxu0
  %1021 = vmatprep.mubr.bf16.mxu0 0
  %1022 = vmatmul.mubr.bf16.gmra.mxu0 %v438
  %v1023 = vpop.f32.mrf.mxu0
  %v1024 = vadd.f32 %v799, %v1023
  %v1025 = vpop.f32.mrf.mxu0
  %v1026 = vpop.f32.mrf.mxu0
  %v1027 = vadd.f32 %v802, %v1026
  %v1028 = vpop.f32.mrf.mxu0
  %1029 = vmatprep.mubr.bf16.mxu0 0
  %1030 = vmatmul.mubr.bf16.gmra.mxu0 %v441
  %v1031 = vpop.f32.mrf.mxu0
  %v1032 = vadd.f32 %v807, %v1031
  %v1033 = vpop.f32.mrf.mxu0
  %v1034 = vpop.f32.mrf.mxu0
  %v1035 = vadd.f32 %v810, %v1034
  %v1036 = vpop.f32.mrf.mxu0
  %1037 = vmatprep.mubr.bf16.mxu0 0
  %1038 = vmatmul.mubr.bf16.gmra.mxu0 %v444
  %v1039 = vpop.f32.mrf.mxu0
  %v1040 = vadd.f32 %v815, %v1039
  %v1041 = vpop.f32.mrf.mxu0
  %v1042 = vpop.f32.mrf.mxu0
  %v1043 = vadd.f32 %v818, %v1042
  %v1044 = vpop.f32.mrf.mxu0
  %1045 = vmatprep.mubr.bf16.mxu0 0
  %1046 = vmatmul.mubr.bf16.gmra.mxu0 %v447
  %v1047 = vpop.f32.mrf.mxu0
  %v1048 = vadd.f32 %v823, %v1047
  %v1049 = vpop.f32.mrf.mxu0
  %v1050 = vpop.f32.mrf.mxu0
  %v1051 = vadd.f32 %v826, %v1050
  %v1052 = vpop.f32.mrf.mxu0
  %1053 = vmatprep.mubr.bf16.mxu0 0
  %1054 = vmatmul.mubr.bf16.gmra.mxu0 %v450
  %v1055 = vpop.f32.mrf.mxu0
  %v1056 = vadd.f32 %v831, %v1055
  %v1057 = vpop.f32.mrf.mxu0
  %v1058 = vpop.f32.mrf.mxu0
  %v1059 = vadd.f32 %v834, %v1058
  %v1060 = vpop.f32.mrf.mxu0
  %1061 = vmatprep.mubr.bf16.mxu0 0
  %1062 = vmatmul.mubr.bf16.gmra.mxu0 %v453
  %v1063 = vpop.f32.mrf.mxu0
  %v1064 = vadd.f32 %v839, %v1063
  %v1065 = vpop.f32.mrf.mxu0
  %v1066 = vpop.f32.mrf.mxu0
  %v1067 = vadd.f32 %v842, %v1066
  %v1068 = vpop.f32.mrf.mxu0
  %1069 = vmatprep.mubr.bf16.mxu0 0
  %1070 = vmatmul.mubr.bf16.gmra.mxu0 %v456
  %v1071 = vpop.f32.mrf.mxu0
  %v1072 = vadd.f32 %v847, %v1071
  %v1073 = vpop.f32.mrf.mxu0
  %v1074 = vpop.f32.mrf.mxu0
  %v1075 = vadd.f32 %v850, %v1074
  %v1076 = vpop.f32.mrf.mxu0
  %1077 = vmatprep.mubr.bf16.mxu0 0
  %1078 = vmatmul.mubr.bf16.gmra.mxu0 %v459
  %v1079 = vpop.f32.mrf.mxu0
  %v1080 = vadd.f32 %v855, %v1079
  %v1081 = vpop.f32.mrf.mxu0
  %v1082 = vpop.f32.mrf.mxu0
  %v1083 = vadd.f32 %v858, %v1082
  %v1084 = vpop.f32.mrf.mxu0
  %1085 = vmatprep.mubr.bf16.mxu0 0
  %1086 = vmatmul.mubr.bf16.gmra.mxu0 %v462
  %v1087 = vpop.f32.mrf.mxu0
  %v1088 = vadd.f32 %v863, %v1087
  %v1089 = vpop.f32.mrf.mxu0
  %v1090 = vpop.f32.mrf.mxu0
  %v1091 = vadd.f32 %v866, %v1090
  %v1092 = vpop.f32.mrf.mxu0
  %1093 = vmatprep.mubr.bf16.mxu0 0
  %1094 = vmatmul.mubr.bf16.gmra.mxu0 %v465
  %v1095 = vpop.f32.mrf.mxu0
  %v1096 = vadd.f32 %v871, %v1095
  %v1097 = vpop.f32.mrf.mxu0
  %v1098 = vpop.f32.mrf.mxu0
  %v1099 = vadd.f32 %v874, %v1098
  %v1100 = vpop.f32.mrf.mxu0
  %1101 = vmatprep.mubr.bf16.mxu0 0
  %1102 = vmatmul.mubr.bf16.gmra.mxu0 %v468
  %v1103 = vpop.f32.mrf.mxu0
  %v1104 = vadd.f32 %v879, %v1103
  %v1105 = vpop.f32.mrf.mxu0
  %v1106 = vpop.f32.mrf.mxu0
  %v1107 = vadd.f32 %v882, %v1106
  %v1108 = vpop.f32.mrf.mxu0
  %1109 = vmatprep.mubr.bf16.mxu0 0
  %1110 = vmatmul.mubr.bf16.gmra.mxu0 %v471
  %v1111 = vpop.f32.mrf.mxu0
  %v1112 = vadd.f32 %v887, %v1111
  %v1113 = vpop.f32.mrf.mxu0
  %v1114 = vpop.f32.mrf.mxu0
  %v1115 = vadd.f32 %v890, %v1114
  %v1116 = vpop.f32.mrf.mxu0
  %1117 = vmatprep.mubr.bf16.mxu0 0
  %1118 = vmatmul.mubr.bf16.gmra.mxu0 %v474
  %v1119 = vpop.f32.mrf.mxu0
  %v1120 = vadd.f32 %v895, %v1119
  %v1121 = vpop.f32.mrf.mxu0
  %v1122 = vpop.f32.mrf.mxu0
  %v1123 = vadd.f32 %v898, %v1122
  %v1124 = vpop.f32.mrf.mxu0
  %1125 = vmatprep.mubr.bf16.mxu0 0
  %1126 = vmatmul.mubr.bf16.gmra.mxu0 %v477
  %v1127 = vpop.f32.mrf.mxu0
  %v1128 = vadd.f32 %v903, %v1127
  %v1129 = vpop.f32.mrf.mxu0
  %v1130 = vpop.f32.mrf.mxu0
  %v1131 = vadd.f32 %v906, %v1130
  %v1132 = vpop.f32.mrf.mxu0
  %1133 = vmatprep.mubr.bf16.mxu0 0
  %1134 = vmatmul.mubr.bf16.gmra.mxu0 %v480
  %v1135 = vpop.f32.mrf.mxu0
  %v1136 = vadd.f32 %v911, %v1135
  %v1137 = vpop.f32.mrf.mxu0
  %v1138 = vpop.f32.mrf.mxu0
  %v1139 = vadd.f32 %v914, %v1138
  %v1140 = vpop.f32.mrf.mxu0
  %1141 = vmatprep.mubr.bf16.mxu0 0
  %1142 = vmatmul.mubr.bf16.gmra.mxu0 %v483
  %v1143 = vpop.f32.mrf.mxu0
  %v1144 = vadd.f32 %v919, %v1143
  %v1145 = vpop.f32.mrf.mxu0
  %v1146 = vpop.f32.mrf.mxu0
  %v1147 = vadd.f32 %v922, %v1146
  %v1148 = vpop.f32.mrf.mxu0
  %1149 = vdwg.mxu0
  %v1150 = vmax.f32 %v960, 0.0
  %v1151 = vmax.f32 %v963, 0.0
  %v1152 = vmax.f32 %v968, 0.0
  %v1153 = vmax.f32 %v971, 0.0
  %v1154 = vmax.f32 %v976, 0.0
  %v1155 = vmax.f32 %v979, 0.0
  %v1156 = vmax.f32 %v984, 0.0
  %v1157 = vmax.f32 %v987, 0.0
  %v1158 = vmax.f32 %v992, 0.0
  %v1159 = vmax.f32 %v995, 0.0
  %v1160 = vmax.f32 %v1000, 0.0
  %v1161 = vmax.f32 %v1003, 0.0
  %v1162 = vmax.f32 %v1008, 0.0
  %v1163 = vmax.f32 %v1011, 0.0
  %v1164 = vmax.f32 %v1016, 0.0
  %v1165 = vmax.f32 %v1019, 0.0
  %v1166 = vmax.f32 %v1024, 0.0
  %v1167 = vmax.f32 %v1027, 0.0
  %v1168 = vmax.f32 %v1032, 0.0
  %v1169 = vmax.f32 %v1035, 0.0
  %v1170 = vmax.f32 %v1040, 0.0
  %v1171 = vmax.f32 %v1043, 0.0
  %v1172 = vmax.f32 %v1048, 0.0
  %v1173 = vmax.f32 %v1051, 0.0
  %v1174 = vmax.f32 %v1056, 0.0
  %v1175 = vmax.f32 %v1059, 0.0
  %v1176 = vmax.f32 %v1064, 0.0
  %v1177 = vmax.f32 %v1067, 0.0
  %v1178 = vmax.f32 %v1072, 0.0
  %v1179 = vmax.f32 %v1075, 0.0
  %v1180 = vmax.f32 %v1080, 0.0
  %v1181 = vmax.f32 %v1083, 0.0
  %v1182 = vmax.f32 %v1088, 0.0
  %v1183 = vmax.f32 %v1091, 0.0
  %v1184 = vmax.f32 %v1096, 0.0
  %v1185 = vmax.f32 %v1099, 0.0
  %v1186 = vmax.f32 %v1104, 0.0
  %v1187 = vmax.f32 %v1107, 0.0
  %v1188 = vmax.f32 %v1112, 0.0
  %v1189 = vmax.f32 %v1115, 0.0
  %v1190 = vmax.f32 %v1120, 0.0
  %v1191 = vmax.f32 %v1123, 0.0
  %v1192 = vmax.f32 %v1128, 0.0
  %v1193 = vmax.f32 %v1131, 0.0
  %v1194 = vmax.f32 %v1136, 0.0
  %v1195 = vmax.f32 %v1139, 0.0
  %v1196 = vmax.f32 %v1144, 0.0
  %v1197 = vmax.f32 %v1147, 0.0
  %v1198 = vpack.c.bf16 %v1151, %v1150
  %v1199 = vpack.c.bf16 %v1153, %v1152
  %v1200 = vpack.c.bf16 %v1155, %v1154
  %v1201 = vpack.c.bf16 %v1157, %v1156
  %v1202 = vpack.c.bf16 %v1159, %v1158
  %v1203 = vpack.c.bf16 %v1161, %v1160
  %v1204 = vpack.c.bf16 %v1163, %v1162
  %v1205 = vpack.c.bf16 %v1165, %v1164
  %v1206 = vpack.c.bf16 %v1167, %v1166
  %v1207 = vpack.c.bf16 %v1169, %v1168
  %v1208 = vpack.c.bf16 %v1171, %v1170
  %v1209 = vpack.c.bf16 %v1173, %v1172
  %v1210 = vpack.c.bf16 %v1175, %v1174
  %v1211 = vpack.c.bf16 %v1177, %v1176
  %v1212 = vpack.c.bf16 %v1179, %v1178
  %v1213 = vpack.c.bf16 %v1181, %v1180
  %v1214 = vpack.c.bf16 %v1183, %v1182
  %v1215 = vpack.c.bf16 %v1185, %v1184
  %v1216 = vpack.c.bf16 %v1187, %v1186
  %v1217 = vpack.c.bf16 %v1189, %v1188
  %v1218 = vpack.c.bf16 %v1191, %v1190
  %v1219 = vpack.c.bf16 %v1193, %v1192
  %v1220 = vpack.c.bf16 %v1195, %v1194
  %v1221 = vpack.c.bf16 %v1197, %v1196
  %v1222 = vld [vmem:[%s3] sm:$0xf]
  %v1223 = vld [vmem:[%s3 + $0x4] sm:$0xf]
  %v1224 = vld [vmem:[%s3 + $0x8] sm:$0xf]
  %v1225 = vld [vmem:[%s3 + $0xc] sm:$0xf]
  %v1226 = vld [vmem:[%s3 + $0x10] sm:$0xf]
  %v1227 = vld [vmem:[%s3 + $0x14] sm:$0xf]
  %v1228 = vld [vmem:[%s3 + $0x18] sm:$0xf]
  %v1229 = vld [vmem:[%s3 + $0x1c] sm:$0xf]
  %v1230 = vld [vmem:[%s3 + $0x20] sm:$0xf]
  %v1231 = vld [vmem:[%s3 + $0x24] sm:$0xf]
  %v1232 = vld [vmem:[%s3 + $0x28] sm:$0xf]
  %v1233 = vld [vmem:[%s3 + $0x2c] sm:$0xf]
  %v1234 = vld [vmem:[%s3 + $0x30] sm:$0xf]
  %v1235 = vld [vmem:[%s3 + $0x34] sm:$0xf]
  %v1236 = vld [vmem:[%s3 + $0x38] sm:$0xf]
  %v1237 = vld [vmem:[%s3 + $0x3c] sm:$0xf]
  %v1254 = vunpack.c.l.b16 %v1222
  %v1255 = vunpack.c.l.b16 %v1223
  %v1256 = vunpack.c.l.b16 %v1224
  %v1257 = vunpack.c.l.b16 %v1225
  %v1258 = vunpack.c.l.b16 %v1226
  %v1259 = vunpack.c.l.b16 %v1227
  %v1260 = vunpack.c.l.b16 %v1228
  %v1261 = vunpack.c.l.b16 %v1229
  %v1262 = vunpack.c.l.b16 %v1230
  %v1263 = vunpack.c.l.b16 %v1231
  %v1264 = vunpack.c.l.b16 %v1232
  %v1265 = vunpack.c.l.b16 %v1233
  %v1266 = vunpack.c.l.b16 %v1234
  %v1267 = vunpack.c.l.b16 %v1235
  %v1268 = vunpack.c.l.b16 %v1236
  %v1269 = vunpack.c.l.b16 %v1237
  %v1270 = vpack.c.b16 %v1255, %v1254
  %v1271 = vpack.c.b16 %v1257, %v1256
  %v1272 = vpack.c.b16 %v1259, %v1258
  %v1273 = vpack.c.b16 %v1261, %v1260
  %v1274 = vpack.c.b16 %v1263, %v1262
  %v1275 = vpack.c.b16 %v1265, %v1264
  %v1276 = vpack.c.b16 %v1267, %v1266
  %v1277 = vpack.c.b16 %v1269, %v1268
  %1286 = vmatprep.subr.bf16.mxu0 0
  %1287 = vmatpush1.bf16.msra.mxu0 %v1277
  %1288 = vmatprep.subr.bf16.mxu0 0
  %1289 = vmatpush1.bf16.msra.mxu0 %v1276
  %1290 = vmatprep.subr.bf16.mxu0 0
  %1291 = vmatpush1.bf16.msra.mxu0 %v1275
  %1292 = vmatprep.subr.bf16.mxu0 0
  %1293 = vmatpush1.bf16.msra.mxu0 %v1274
  %1294 = vmatprep.subr.bf16.mxu0 0
  %1295 = vmatpush1.bf16.msra.mxu0 %v1273
  %1296 = vmatprep.subr.bf16.mxu0 0
  %1297 = vmatpush1.bf16.msra.mxu0 %v1272
  %1298 = vmatprep.subr.bf16.mxu0 0
  %1299 = vmatpush1.bf16.msra.mxu0 %v1271
  %1300 = vmatprep.subr.bf16.mxu0 0
  %1301 = vmatpush1.bf16.msra.mxu0 %v1270
  %1302 = vmatprep.subr.bf16.mxu0 0
  %1303 = vmatpush2.bf16.msra.mxu0 0
  %1304 = vmatprep.subr.bf16.mxu0 0
  %1305 = vmatpush2.bf16.msra.mxu0 0
  %1306 = vmatprep.subr.bf16.mxu0 0
  %1307 = vmatpush2.bf16.msra.mxu0 0
  %1308 = vmatprep.subr.bf16.mxu0 0
  %1309 = vmatpush2.bf16.msra.mxu0 0
  %1310 = vmatprep.subr.bf16.mxu0 0
  %1311 = vmatpush2.bf16.msra.mxu0 0
  %1312 = vmatprep.subr.bf16.mxu0 0
  %1313 = vmatpush2.bf16.msra.mxu0 0
  %1314 = vmatprep.subr.bf16.mxu0 0
  %1315 = vmatpush2.bf16.msra.mxu0 0
  %1316 = vmatprep.subr.bf16.mxu0 0
  %1317 = vmatpush2.bf16.msra.mxu0 0
  %1318 = vmatprep.mubr.bf16.mxu0 0
  %1319 = vmatmul.mubr.bf16.gmra.mxu0 %v1198
  %v1320 = vpop.f32.mrf.mxu0
  %v1321 = vadd.f32 0.0, %v1320
  %v1322 = vpop.f32.mrf.mxu0
  %v1323 = vpop.f32.mrf.mxu0
  %v1324 = vadd.f32 0.0, %v1323
  %v1325 = vpop.f32.mrf.mxu0
  %1326 = vmatprep.mubr.bf16.mxu0 0
  %1327 = vmatmul.mubr.bf16.gmra.mxu0 %v1199
  %v1328 = vpop.f32.mrf.mxu0
  %v1329 = vadd.f32 0.0, %v1328
  %v1330 = vpop.f32.mrf.mxu0
  %v1331 = vpop.f32.mrf.mxu0
  %v1332 = vadd.f32 0.0, %v1331
  %v1333 = vpop.f32.mrf.mxu0
  %1334 = vmatprep.mubr.bf16.mxu0 0
  %1335 = vmatmul.mubr.bf16.gmra.mxu0 %v1200
  %v1336 = vpop.f32.mrf.mxu0
  %v1337 = vadd.f32 0.0, %v1336
  %v1338 = vpop.f32.mrf.mxu0
  %v1339 = vpop.f32.mrf.mxu0
  %v1340 = vadd.f32 0.0, %v1339
  %v1341 = vpop.f32.mrf.mxu0
  %1342 = vmatprep.mubr.bf16.mxu0 0
  %1343 = vmatmul.mubr.bf16.gmra.mxu0 %v1201
  %v1344 = vpop.f32.mrf.mxu0
  %v1345 = vadd.f32 0.0, %v1344
  %v1346 = vpop.f32.mrf.mxu0
  %v1347 = vpop.f32.mrf.mxu0
  %v1348 = vadd.f32 0.0, %v1347
  %v1349 = vpop.f32.mrf.mxu0
  %1350 = vmatprep.mubr.bf16.mxu0 0
  %1351 = vmatmul.mubr.bf16.gmra.mxu0 %v1202
  %v1352 = vpop.f32.mrf.mxu0
  %v1353 = vadd.f32 0.0, %v1352
  %v1354 = vpop.f32.mrf.mxu0
  %v1355 = vpop.f32.mrf.mxu0
  %v1356 = vadd.f32 0.0, %v1355
  %v1357 = vpop.f32.mrf.mxu0
  %1358 = vmatprep.mubr.bf16.mxu0 0
  %1359 = vmatmul.mubr.bf16.gmra.mxu0 %v1203
  %v1360 = vpop.f32.mrf.mxu0
  %v1361 = vadd.f32 0.0, %v1360
  %v1362 = vpop.f32.mrf.mxu0
  %v1363 = vpop.f32.mrf.mxu0
  %v1364 = vadd.f32 0.0, %v1363
  %v1365 = vpop.f32.mrf.mxu0
  %1366 = vmatprep.mubr.bf16.mxu0 0
  %1367 = vmatmul.mubr.bf16.gmra.mxu0 %v1204
  %v1368 = vpop.f32.mrf.mxu0
  %v1369 = vadd.f32 0.0, %v1368
  %v1370 = vpop.f32.mrf.mxu0
  %v1371 = vpop.f32.mrf.mxu0
  %v1372 = vadd.f32 0.0, %v1371
  %v1373 = vpop.f32.mrf.mxu0
  %1374 = vmatprep.mubr.bf16.mxu0 0
  %1375 = vmatmul.mubr.bf16.gmra.mxu0 %v1205
  %v1376 = vpop.f32.mrf.mxu0
  %v1377 = vadd.f32 0.0, %v1376
  %v1378 = vpop.f32.mrf.mxu0
  %v1379 = vpop.f32.mrf.mxu0
  %v1380 = vadd.f32 0.0, %v1379
  %v1381 = vpop.f32.mrf.mxu0
  %1382 = vmatprep.mubr.bf16.mxu0 0
  %1383 = vmatmul.mubr.bf16.gmra.mxu0 %v1206
  %v1384 = vpop.f32.mrf.mxu0
  %v1385 = vadd.f32 0.0, %v1384
  %v1386 = vpop.f32.mrf.mxu0
  %v1387 = vpop.f32.mrf.mxu0
  %v1388 = vadd.f32 0.0, %v1387
  %v1389 = vpop.f32.mrf.mxu0
  %1390 = vmatprep.mubr.bf16.mxu0 0
  %1391 = vmatmul.mubr.bf16.gmra.mxu0 %v1207
  %v1392 = vpop.f32.mrf.mxu0
  %v1393 = vadd.f32 0.0, %v1392
  %v1394 = vpop.f32.mrf.mxu0
  %v1395 = vpop.f32.mrf.mxu0
  %v1396 = vadd.f32 0.0, %v1395
  %v1397 = vpop.f32.mrf.mxu0
  %1398 = vmatprep.mubr.bf16.mxu0 0
  %1399 = vmatmul.mubr.bf16.gmra.mxu0 %v1208
  %v1400 = vpop.f32.mrf.mxu0
  %v1401 = vadd.f32 0.0, %v1400
  %v1402 = vpop.f32.mrf.mxu0
  %v1403 = vpop.f32.mrf.mxu0
  %v1404 = vadd.f32 0.0, %v1403
  %v1405 = vpop.f32.mrf.mxu0
  %1406 = vmatprep.mubr.bf16.mxu0 0
  %1407 = vmatmul.mubr.bf16.gmra.mxu0 %v1209
  %v1408 = vpop.f32.mrf.mxu0
  %v1409 = vadd.f32 0.0, %v1408
  %v1410 = vpop.f32.mrf.mxu0
  %v1411 = vpop.f32.mrf.mxu0
  %v1412 = vadd.f32 0.0, %v1411
  %v1413 = vpop.f32.mrf.mxu0
  %1414 = vmatprep.mubr.bf16.mxu0 0
  %1415 = vmatmul.mubr.bf16.gmra.mxu0 %v1210
  %v1416 = vpop.f32.mrf.mxu0
  %v1417 = vadd.f32 0.0, %v1416
  %v1418 = vpop.f32.mrf.mxu0
  %v1419 = vpop.f32.mrf.mxu0
  %v1420 = vadd.f32 0.0, %v1419
  %v1421 = vpop.f32.mrf.mxu0
  %1422 = vmatprep.mubr.bf16.mxu0 0
  %1423 = vmatmul.mubr.bf16.gmra.mxu0 %v1211
  %v1424 = vpop.f32.mrf.mxu0
  %v1425 = vadd.f32 0.0, %v1424
  %v1426 = vpop.f32.mrf.mxu0
  %v1427 = vpop.f32.mrf.mxu0
  %v1428 = vadd.f32 0.0, %v1427
  %v1429 = vpop.f32.mrf.mxu0
  %1430 = vmatprep.mubr.bf16.mxu0 0
  %1431 = vmatmul.mubr.bf16.gmra.mxu0 %v1212
  %v1432 = vpop.f32.mrf.mxu0
  %v1433 = vadd.f32 0.0, %v1432
  %v1434 = vpop.f32.mrf.mxu0
  %v1435 = vpop.f32.mrf.mxu0
  %v1436 = vadd.f32 0.0, %v1435
  %v1437 = vpop.f32.mrf.mxu0
  %1438 = vmatprep.mubr.bf16.mxu0 0
  %1439 = vmatmul.mubr.bf16.gmra.mxu0 %v1213
  %v1440 = vpop.f32.mrf.mxu0
  %v1441 = vadd.f32 0.0, %v1440
  %v1442 = vpop.f32.mrf.mxu0
  %v1443 = vpop.f32.mrf.mxu0
  %v1444 = vadd.f32 0.0, %v1443
  %v1445 = vpop.f32.mrf.mxu0
  %1446 = vmatprep.mubr.bf16.mxu0 0
  %1447 = vmatmul.mubr.bf16.gmra.mxu0 %v1214
  %v1448 = vpop.f32.mrf.mxu0
  %v1449 = vadd.f32 0.0, %v1448
  %v1450 = vpop.f32.mrf.mxu0
  %v1451 = vpop.f32.mrf.mxu0
  %v1452 = vadd.f32 0.0, %v1451
  %v1453 = vpop.f32.mrf.mxu0
  %1454 = vmatprep.mubr.bf16.mxu0 0
  %1455 = vmatmul.mubr.bf16.gmra.mxu0 %v1215
  %v1456 = vpop.f32.mrf.mxu0
  %v1457 = vadd.f32 0.0, %v1456
  %v1458 = vpop.f32.mrf.mxu0
  %v1459 = vpop.f32.mrf.mxu0
  %v1460 = vadd.f32 0.0, %v1459
  %v1461 = vpop.f32.mrf.mxu0
  %1462 = vmatprep.mubr.bf16.mxu0 0
  %1463 = vmatmul.mubr.bf16.gmra.mxu0 %v1216
  %v1464 = vpop.f32.mrf.mxu0
  %v1465 = vadd.f32 0.0, %v1464
  %v1466 = vpop.f32.mrf.mxu0
  %v1467 = vpop.f32.mrf.mxu0
  %v1468 = vadd.f32 0.0, %v1467
  %v1469 = vpop.f32.mrf.mxu0
  %1470 = vmatprep.mubr.bf16.mxu0 0
  %1471 = vmatmul.mubr.bf16.gmra.mxu0 %v1217
  %v1472 = vpop.f32.mrf.mxu0
  %v1473 = vadd.f32 0.0, %v1472
  %v1474 = vpop.f32.mrf.mxu0
  %v1475 = vpop.f32.mrf.mxu0
  %v1476 = vadd.f32 0.0, %v1475
  %v1477 = vpop.f32.mrf.mxu0
  %1478 = vmatprep.mubr.bf16.mxu0 0
  %1479 = vmatmul.mubr.bf16.gmra.mxu0 %v1218
  %v1480 = vpop.f32.mrf.mxu0
  %v1481 = vadd.f32 0.0, %v1480
  %v1482 = vpop.f32.mrf.mxu0
  %v1483 = vpop.f32.mrf.mxu0
  %v1484 = vadd.f32 0.0, %v1483
  %v1485 = vpop.f32.mrf.mxu0
  %1486 = vmatprep.mubr.bf16.mxu0 0
  %1487 = vmatmul.mubr.bf16.gmra.mxu0 %v1219
  %v1488 = vpop.f32.mrf.mxu0
  %v1489 = vadd.f32 0.0, %v1488
  %v1490 = vpop.f32.mrf.mxu0
  %v1491 = vpop.f32.mrf.mxu0
  %v1492 = vadd.f32 0.0, %v1491
  %v1493 = vpop.f32.mrf.mxu0
  %1494 = vmatprep.mubr.bf16.mxu0 0
  %1495 = vmatmul.mubr.bf16.gmra.mxu0 %v1220
  %v1496 = vpop.f32.mrf.mxu0
  %v1497 = vadd.f32 0.0, %v1496
  %v1498 = vpop.f32.mrf.mxu0
  %v1499 = vpop.f32.mrf.mxu0
  %v1500 = vadd.f32 0.0, %v1499
  %v1501 = vpop.f32.mrf.mxu0
  %1502 = vmatprep.mubr.bf16.mxu0 0
  %1503 = vmatmul.mubr.bf16.gmra.mxu0 %v1221
  %v1504 = vpop.f32.mrf.mxu0
  %v1505 = vadd.f32 0.0, %v1504
  %v1506 = vpop.f32.mrf.mxu0
  %v1507 = vpop.f32.mrf.mxu0
  %v1508 = vadd.f32 0.0, %v1507
  %v1509 = vpop.f32.mrf.mxu0
  %1510 = vdwg.mxu0
  %v1511 = vpack.c.bf16 %v1324, %v1321
  %v1512 = vpack.c.bf16 %v1332, %v1329
  %v1513 = vpack.c.bf16 %v1340, %v1337
  %v1514 = vpack.c.bf16 %v1348, %v1345
  %v1515 = vpack.c.bf16 %v1356, %v1353
  %v1516 = vpack.c.bf16 %v1364, %v1361
  %v1517 = vpack.c.bf16 %v1372, %v1369
  %v1518 = vpack.c.bf16 %v1380, %v1377
  %v1519 = vpack.c.bf16 %v1388, %v1385
  %v1520 = vpack.c.bf16 %v1396, %v1393
  %v1521 = vpack.c.bf16 %v1404, %v1401
  %v1522 = vpack.c.bf16 %v1412, %v1409
  %v1523 = vpack.c.bf16 %v1420, %v1417
  %v1524 = vpack.c.bf16 %v1428, %v1425
  %v1525 = vpack.c.bf16 %v1436, %v1433
  %v1526 = vpack.c.bf16 %v1444, %v1441
  %v1527 = vpack.c.bf16 %v1452, %v1449
  %v1528 = vpack.c.bf16 %v1460, %v1457
  %v1529 = vpack.c.bf16 %v1468, %v1465
  %v1530 = vpack.c.bf16 %v1476, %v1473
  %v1531 = vpack.c.bf16 %v1484, %v1481
  %v1532 = vpack.c.bf16 %v1492, %v1489
  %v1533 = vpack.c.bf16 %v1500, %v1497
  %v1534 = vpack.c.bf16 %v1508, %v1505
  %v1535 = vld [vmem:[%s4] sm:$0x1]
  %v1537 = vlaneseq
  %v1538 = vshrl.u32 %v1537, 7
  %v1539 = vsub.s32 0, %v1538
  %v1540 = vrot.slane %v1535, %v1539
  %1542 = vmatprep.subr.bf16.mxu0 0
  %1543 = vmatpush1.bf16.msra.mxu0 %v1518
  %1544 = vmatprep.subr.bf16.mxu0 0
  %1545 = vmatpush1.bf16.msra.mxu0 %v1517
  %1546 = vmatprep.subr.bf16.mxu0 0
  %1547 = vmatpush1.bf16.msra.mxu0 %v1516
  %1548 = vmatprep.subr.bf16.mxu0 0
  %1549 = vmatpush1.bf16.msra.mxu0 %v1515
  %1550 = vmatprep.subr.bf16.mxu0 0
  %1551 = vmatpush1.bf16.msra.mxu0 %v1514
  %1552 = vmatprep.subr.bf16.mxu0 0
  %1553 = vmatpush1.bf16.msra.mxu0 %v1513
  %1554 = vmatprep.subr.bf16.mxu0 0
  %1555 = vmatpush1.bf16.msra.mxu0 %v1512
  %1556 = vmatprep.subr.bf16.mxu0 0
  %1557 = vmatpush1.bf16.msra.mxu0 %v1511
  %1558 = vmatprep.subr.bf16.mxu0 0
  %1559 = vmatpush2.bf16.msra.mxu0 %v1526
  %1560 = vmatprep.subr.bf16.mxu0 0
  %1561 = vmatpush2.bf16.msra.mxu0 %v1525
  %1562 = vmatprep.subr.bf16.mxu0 0
  %1563 = vmatpush2.bf16.msra.mxu0 %v1524
  %1564 = vmatprep.subr.bf16.mxu0 0
  %1565 = vmatpush2.bf16.msra.mxu0 %v1523
  %1566 = vmatprep.subr.bf16.mxu0 0
  %1567 = vmatpush2.bf16.msra.mxu0 %v1522
  %1568 = vmatprep.subr.bf16.mxu0 0
  %1569 = vmatpush2.bf16.msra.mxu0 %v1521
  %1570 = vmatprep.subr.bf16.mxu0 0
  %1571 = vmatpush2.bf16.msra.mxu0 %v1520
  %1572 = vmatprep.subr.bf16.mxu0 0
  %1573 = vmatpush2.bf16.msra.mxu0 %v1519
  %1574 = vmatprep.mubr.bf16.mxu0 %v413
  %1575 = vmatmul.mubr.bf16.gmra.mxu0 %v412
  %v1576 = vpop.f32.mrf.mxu0
  %v1577 = vadd.f32 %v1540, %v1576
  %v1578 = vpop.f32.mrf.mxu0
  %v1579 = vpop.f32.mrf.mxu0
  %v1580 = vadd.f32 %v1540, %v1579
  %v1581 = vpop.f32.mrf.mxu0
  %1582 = vmatprep.mubr.bf16.mxu0 %v416
  %1583 = vmatmul.mubr.bf16.gmra.mxu0 %v415
  %v1584 = vpop.f32.mrf.mxu0
  %v1585 = vadd.f32 %v1540, %v1584
  %v1586 = vpop.f32.mrf.mxu0
  %v1587 = vpop.f32.mrf.mxu0
  %v1588 = vadd.f32 %v1540, %v1587
  %v1589 = vpop.f32.mrf.mxu0
  %1590 = vmatprep.mubr.bf16.mxu0 %v419
  %1591 = vmatmul.mubr.bf16.gmra.mxu0 %v418
  %v1592 = vpop.f32.mrf.mxu0
  %v1593 = vadd.f32 %v1540, %v1592
  %v1594 = vpop.f32.mrf.mxu0
  %v1595 = vpop.f32.mrf.mxu0
  %v1596 = vadd.f32 %v1540, %v1595
  %v1597 = vpop.f32.mrf.mxu0
  %1598 = vmatprep.mubr.bf16.mxu0 %v422
  %1599 = vmatmul.mubr.bf16.gmra.mxu0 %v421
  %v1600 = vpop.f32.mrf.mxu0
  %v1601 = vadd.f32 %v1540, %v1600
  %v1602 = vpop.f32.mrf.mxu0
  %v1603 = vpop.f32.mrf.mxu0
  %v1604 = vadd.f32 %v1540, %v1603
  %v1605 = vpop.f32.mrf.mxu0
  %1606 = vmatprep.mubr.bf16.mxu0 %v425
  %1607 = vmatmul.mubr.bf16.gmra.mxu0 %v424
  %v1608 = vpop.f32.mrf.mxu0
  %v1609 = vadd.f32 %v1540, %v1608
  %v1610 = vpop.f32.mrf.mxu0
  %v1611 = vpop.f32.mrf.mxu0
  %v1612 = vadd.f32 %v1540, %v1611
  %v1613 = vpop.f32.mrf.mxu0
  %1614 = vmatprep.mubr.bf16.mxu0 %v428
  %1615 = vmatmul.mubr.bf16.gmra.mxu0 %v427
  %v1616 = vpop.f32.mrf.mxu0
  %v1617 = vadd.f32 %v1540, %v1616
  %v1618 = vpop.f32.mrf.mxu0
  %v1619 = vpop.f32.mrf.mxu0
  %v1620 = vadd.f32 %v1540, %v1619
  %v1621 = vpop.f32.mrf.mxu0
  %1622 = vmatprep.mubr.bf16.mxu0 %v431
  %1623 = vmatmul.mubr.bf16.gmra.mxu0 %v430
  %v1624 = vpop.f32.mrf.mxu0
  %v1625 = vadd.f32 %v1540, %v1624
  %v1626 = vpop.f32.mrf.mxu0
  %v1627 = vpop.f32.mrf.mxu0
  %v1628 = vadd.f32 %v1540, %v1627
  %v1629 = vpop.f32.mrf.mxu0
  %1630 = vmatprep.mubr.bf16.mxu0 %v434
  %1631 = vmatmul.mubr.bf16.gmra.mxu0 %v433
  %v1632 = vpop.f32.mrf.mxu0
  %v1633 = vadd.f32 %v1540, %v1632
  %v1634 = vpop.f32.mrf.mxu0
  %v1635 = vpop.f32.mrf.mxu0
  %v1636 = vadd.f32 %v1540, %v1635
  %v1637 = vpop.f32.mrf.mxu0
  %1638 = vmatprep.mubr.bf16.mxu0 %v437
  %1639 = vmatmul.mubr.bf16.gmra.mxu0 %v436
  %v1640 = vpop.f32.mrf.mxu0
  %v1641 = vadd.f32 %v1540, %v1640
  %v1642 = vpop.f32.mrf.mxu0
  %v1643 = vpop.f32.mrf.mxu0
  %v1644 = vadd.f32 %v1540, %v1643
  %v1645 = vpop.f32.mrf.mxu0
  %1646 = vmatprep.mubr.bf16.mxu0 %v440
  %1647 = vmatmul.mubr.bf16.gmra.mxu0 %v439
  %v1648 = vpop.f32.mrf.mxu0
  %v1649 = vadd.f32 %v1540, %v1648
  %v1650 = vpop.f32.mrf.mxu0
  %v1651 = vpop.f32.mrf.mxu0
  %v1652 = vadd.f32 %v1540, %v1651
  %v1653 = vpop.f32.mrf.mxu0
  %1654 = vmatprep.mubr.bf16.mxu0 %v443
  %1655 = vmatmul.mubr.bf16.gmra.mxu0 %v442
  %v1656 = vpop.f32.mrf.mxu0
  %v1657 = vadd.f32 %v1540, %v1656
  %v1658 = vpop.f32.mrf.mxu0
  %v1659 = vpop.f32.mrf.mxu0
  %v1660 = vadd.f32 %v1540, %v1659
  %v1661 = vpop.f32.mrf.mxu0
  %1662 = vmatprep.mubr.bf16.mxu0 %v446
  %1663 = vmatmul.mubr.bf16.gmra.mxu0 %v445
  %v1664 = vpop.f32.mrf.mxu0
  %v1665 = vadd.f32 %v1540, %v1664
  %v1666 = vpop.f32.mrf.mxu0
  %v1667 = vpop.f32.mrf.mxu0
  %v1668 = vadd.f32 %v1540, %v1667
  %v1669 = vpop.f32.mrf.mxu0
  %1670 = vmatprep.mubr.bf16.mxu0 %v449
  %1671 = vmatmul.mubr.bf16.gmra.mxu0 %v448
  %v1672 = vpop.f32.mrf.mxu0
  %v1673 = vadd.f32 %v1540, %v1672
  %v1674 = vpop.f32.mrf.mxu0
  %v1675 = vpop.f32.mrf.mxu0
  %v1676 = vadd.f32 %v1540, %v1675
  %v1677 = vpop.f32.mrf.mxu0
  %1678 = vmatprep.mubr.bf16.mxu0 %v452
  %1679 = vmatmul.mubr.bf16.gmra.mxu0 %v451
  %v1680 = vpop.f32.mrf.mxu0
  %v1681 = vadd.f32 %v1540, %v1680
  %v1682 = vpop.f32.mrf.mxu0
  %v1683 = vpop.f32.mrf.mxu0
  %v1684 = vadd.f32 %v1540, %v1683
  %v1685 = vpop.f32.mrf.mxu0
  %1686 = vmatprep.mubr.bf16.mxu0 %v455
  %1687 = vmatmul.mubr.bf16.gmra.mxu0 %v454
  %v1688 = vpop.f32.mrf.mxu0
  %v1689 = vadd.f32 %v1540, %v1688
  %v1690 = vpop.f32.mrf.mxu0
  %v1691 = vpop.f32.mrf.mxu0
  %v1692 = vadd.f32 %v1540, %v1691
  %v1693 = vpop.f32.mrf.mxu0
  %1694 = vmatprep.mubr.bf16.mxu0 %v458
  %1695 = vmatmul.mubr.bf16.gmra.mxu0 %v457
  %v1696 = vpop.f32.mrf.mxu0
  %v1697 = vadd.f32 %v1540, %v1696
  %v1698 = vpop.f32.mrf.mxu0
  %v1699 = vpop.f32.mrf.mxu0
  %v1700 = vadd.f32 %v1540, %v1699
  %v1701 = vpop.f32.mrf.mxu0
  %1702 = vmatprep.mubr.bf16.mxu0 %v461
  %1703 = vmatmul.mubr.bf16.gmra.mxu0 %v460
  %v1704 = vpop.f32.mrf.mxu0
  %v1705 = vadd.f32 %v1540, %v1704
  %v1706 = vpop.f32.mrf.mxu0
  %v1707 = vpop.f32.mrf.mxu0
  %v1708 = vadd.f32 %v1540, %v1707
  %v1709 = vpop.f32.mrf.mxu0
  %1710 = vmatprep.mubr.bf16.mxu0 %v464
  %1711 = vmatmul.mubr.bf16.gmra.mxu0 %v463
  %v1712 = vpop.f32.mrf.mxu0
  %v1713 = vadd.f32 %v1540, %v1712
  %v1714 = vpop.f32.mrf.mxu0
  %v1715 = vpop.f32.mrf.mxu0
  %v1716 = vadd.f32 %v1540, %v1715
  %v1717 = vpop.f32.mrf.mxu0
  %1718 = vmatprep.mubr.bf16.mxu0 %v467
  %1719 = vmatmul.mubr.bf16.gmra.mxu0 %v466
  %v1720 = vpop.f32.mrf.mxu0
  %v1721 = vadd.f32 %v1540, %v1720
  %v1722 = vpop.f32.mrf.mxu0
  %v1723 = vpop.f32.mrf.mxu0
  %v1724 = vadd.f32 %v1540, %v1723
  %v1725 = vpop.f32.mrf.mxu0
  %1726 = vmatprep.mubr.bf16.mxu0 %v470
  %1727 = vmatmul.mubr.bf16.gmra.mxu0 %v469
  %v1728 = vpop.f32.mrf.mxu0
  %v1729 = vadd.f32 %v1540, %v1728
  %v1730 = vpop.f32.mrf.mxu0
  %v1731 = vpop.f32.mrf.mxu0
  %v1732 = vadd.f32 %v1540, %v1731
  %v1733 = vpop.f32.mrf.mxu0
  %1734 = vmatprep.mubr.bf16.mxu0 %v473
  %1735 = vmatmul.mubr.bf16.gmra.mxu0 %v472
  %v1736 = vpop.f32.mrf.mxu0
  %v1737 = vadd.f32 %v1540, %v1736
  %v1738 = vpop.f32.mrf.mxu0
  %v1739 = vpop.f32.mrf.mxu0
  %v1740 = vadd.f32 %v1540, %v1739
  %v1741 = vpop.f32.mrf.mxu0
  %1742 = vmatprep.mubr.bf16.mxu0 %v476
  %1743 = vmatmul.mubr.bf16.gmra.mxu0 %v475
  %v1744 = vpop.f32.mrf.mxu0
  %v1745 = vadd.f32 %v1540, %v1744
  %v1746 = vpop.f32.mrf.mxu0
  %v1747 = vpop.f32.mrf.mxu0
  %v1748 = vadd.f32 %v1540, %v1747
  %v1749 = vpop.f32.mrf.mxu0
  %1750 = vmatprep.mubr.bf16.mxu0 %v479
  %1751 = vmatmul.mubr.bf16.gmra.mxu0 %v478
  %v1752 = vpop.f32.mrf.mxu0
  %v1753 = vadd.f32 %v1540, %v1752
  %v1754 = vpop.f32.mrf.mxu0
  %v1755 = vpop.f32.mrf.mxu0
  %v1756 = vadd.f32 %v1540, %v1755
  %v1757 = vpop.f32.mrf.mxu0
  %1758 = vmatprep.mubr.bf16.mxu0 %v482
  %1759 = vmatmul.mubr.bf16.gmra.mxu0 %v481
  %v1760 = vpop.f32.mrf.mxu0
  %v1761 = vadd.f32 %v1540, %v1760
  %v1762 = vpop.f32.mrf.mxu0
  %v1763 = vpop.f32.mrf.mxu0
  %v1764 = vadd.f32 %v1540, %v1763
  %v1765 = vpop.f32.mrf.mxu0
  %1766 = vdwg.mxu0
  %1767 = vmatprep.subr.bf16.mxu0 0
  %1768 = vmatpush1.bf16.msra.mxu0 %v1534
  %1769 = vmatprep.subr.bf16.mxu0 0
  %1770 = vmatpush1.bf16.msra.mxu0 %v1533
  %1771 = vmatprep.subr.bf16.mxu0 0
  %1772 = vmatpush1.bf16.msra.mxu0 %v1532
  %1773 = vmatprep.subr.bf16.mxu0 0
  %1774 = vmatpush1.bf16.msra.mxu0 %v1531
  %1775 = vmatprep.subr.bf16.mxu0 0
  %1776 = vmatpush1.bf16.msra.mxu0 %v1530
  %1777 = vmatprep.subr.bf16.mxu0 0
  %1778 = vmatpush1.bf16.msra.mxu0 %v1529
  %1779 = vmatprep.subr.bf16.mxu0 0
  %1780 = vmatpush1.bf16.msra.mxu0 %v1528
  %1781 = vmatprep.subr.bf16.mxu0 0
  %1782 = vmatpush1.bf16.msra.mxu0 %v1527
  %1783 = vmatprep.subr.bf16.mxu0 0
  %1784 = vmatpush2.bf16.msra.mxu0 0
  %1785 = vmatprep.subr.bf16.mxu0 0
  %1786 = vmatpush2.bf16.msra.mxu0 0
  %1787 = vmatprep.subr.bf16.mxu0 0
  %1788 = vmatpush2.bf16.msra.mxu0 0
  %1789 = vmatprep.subr.bf16.mxu0 0
  %1790 = vmatpush2.bf16.msra.mxu0 0
  %1791 = vmatprep.subr.bf16.mxu0 0
  %1792 = vmatpush2.bf16.msra.mxu0 0
  %1793 = vmatprep.subr.bf16.mxu0 0
  %1794 = vmatpush2.bf16.msra.mxu0 0
  %1795 = vmatprep.subr.bf16.mxu0 0
  %1796 = vmatpush2.bf16.msra.mxu0 0
  %1797 = vmatprep.subr.bf16.mxu0 0
  %1798 = vmatpush2.bf16.msra.mxu0 0
  %1799 = vmatprep.mubr.bf16.mxu0 0
  %1800 = vmatmul.mubr.bf16.gmra.mxu0 %v414
  %v1801 = vpop.f32.mrf.mxu0
  %v1802 = vadd.f32 %v1577, %v1801
  %v1803 = vpop.f32.mrf.mxu0
  %v1804 = vpop.f32.mrf.mxu0
  %v1805 = vadd.f32 %v1580, %v1804
  %v1806 = vpop.f32.mrf.mxu0
  %1807 = vmatprep.mubr.bf16.mxu0 0
  %1808 = vmatmul.mubr.bf16.gmra.mxu0 %v417
  %v1809 = vpop.f32.mrf.mxu0
  %v1810 = vadd.f32 %v1585, %v1809
  %v1811 = vpop.f32.mrf.mxu0
  %v1812 = vpop.f32.mrf.mxu0
  %v1813 = vadd.f32 %v1588, %v1812
  %v1814 = vpop.f32.mrf.mxu0
  %1815 = vmatprep.mubr.bf16.mxu0 0
  %1816 = vmatmul.mubr.bf16.gmra.mxu0 %v420
  %v1817 = vpop.f32.mrf.mxu0
  %v1818 = vadd.f32 %v1593, %v1817
  %v1819 = vpop.f32.mrf.mxu0
  %v1820 = vpop.f32.mrf.mxu0
  %v1821 = vadd.f32 %v1596, %v1820
  %v1822 = vpop.f32.mrf.mxu0
  %1823 = vmatprep.mubr.bf16.mxu0 0
  %1824 = vmatmul.mubr.bf16.gmra.mxu0 %v423
  %v1825 = vpop.f32.mrf.mxu0
  %v1826 = vadd.f32 %v1601, %v1825
  %v1827 = vpop.f32.mrf.mxu0
  %v1828 = vpop.f32.mrf.mxu0
  %v1829 = vadd.f32 %v1604, %v1828
  %v1830 = vpop.f32.mrf.mxu0
  %1831 = vmatprep.mubr.bf16.mxu0 0
  %1832 = vmatmul.mubr.bf16.gmra.mxu0 %v426
  %v1833 = vpop.f32.mrf.mxu0
  %v1834 = vadd.f32 %v1609, %v1833
  %v1835 = vpop.f32.mrf.mxu0
  %v1836 = vpop.f32.mrf.mxu0
  %v1837 = vadd.f32 %v1612, %v1836
  %v1838 = vpop.f32.mrf.mxu0
  %1839 = vmatprep.mubr.bf16.mxu0 0
  %1840 = vmatmul.mubr.bf16.gmra.mxu0 %v429
  %v1841 = vpop.f32.mrf.mxu0
  %v1842 = vadd.f32 %v1617, %v1841
  %v1843 = vpop.f32.mrf.mxu0
  %v1844 = vpop.f32.mrf.mxu0
  %v1845 = vadd.f32 %v1620, %v1844
  %v1846 = vpop.f32.mrf.mxu0
  %1847 = vmatprep.mubr.bf16.mxu0 0
  %1848 = vmatmul.mubr.bf16.gmra.mxu0 %v432
  %v1849 = vpop.f32.mrf.mxu0
  %v1850 = vadd.f32 %v1625, %v1849
  %v1851 = vpop.f32.mrf.mxu0
  %v1852 = vpop.f32.mrf.mxu0
  %v1853 = vadd.f32 %v1628, %v1852
  %v1854 = vpop.f32.mrf.mxu0
  %1855 = vmatprep.mubr.bf16.mxu0 0
  %1856 = vmatmul.mubr.bf16.gmra.mxu0 %v435
  %v1857 = vpop.f32.mrf.mxu0
  %v1858 = vadd.f32 %v1633, %v1857
  %v1859 = vpop.f32.mrf.mxu0
  %v1860 = vpop.f32.mrf.mxu0
  %v1861 = vadd.f32 %v1636, %v1860
  %v1862 = vpop.f32.mrf.mxu0
  %1863 = vmatprep.mubr.bf16.mxu0 0
  %1864 = vmatmul.mubr.bf16.gmra.mxu0 %v438
  %v1865 = vpop.f32.mrf.mxu0
  %v1866 = vadd.f32 %v1641, %v1865
  %v1867 = vpop.f32.mrf.mxu0
  %v1868 = vpop.f32.mrf.mxu0
  %v1869 = vadd.f32 %v1644, %v1868
  %v1870 = vpop.f32.mrf.mxu0
  %1871 = vmatprep.mubr.bf16.mxu0 0
  %1872 = vmatmul.mubr.bf16.gmra.mxu0 %v441
  %v1873 = vpop.f32.mrf.mxu0
  %v1874 = vadd.f32 %v1649, %v1873
  %v1875 = vpop.f32.mrf.mxu0
  %v1876 = vpop.f32.mrf.mxu0
  %v1877 = vadd.f32 %v1652, %v1876
  %v1878 = vpop.f32.mrf.mxu0
  %1879 = vmatprep.mubr.bf16.mxu0 0
  %1880 = vmatmul.mubr.bf16.gmra.mxu0 %v444
  %v1881 = vpop.f32.mrf.mxu0
  %v1882 = vadd.f32 %v1657, %v1881
  %v1883 = vpop.f32.mrf.mxu0
  %v1884 = vpop.f32.mrf.mxu0
  %v1885 = vadd.f32 %v1660, %v1884
  %v1886 = vpop.f32.mrf.mxu0
  %1887 = vmatprep.mubr.bf16.mxu0 0
  %1888 = vmatmul.mubr.bf16.gmra.mxu0 %v447
  %v1889 = vpop.f32.mrf.mxu0
  %v1890 = vadd.f32 %v1665, %v1889
  %v1891 = vpop.f32.mrf.mxu0
  %v1892 = vpop.f32.mrf.mxu0
  %v1893 = vadd.f32 %v1668, %v1892
  %v1894 = vpop.f32.mrf.mxu0
  %1895 = vmatprep.mubr.bf16.mxu0 0
  %1896 = vmatmul.mubr.bf16.gmra.mxu0 %v450
  %v1897 = vpop.f32.mrf.mxu0
  %v1898 = vadd.f32 %v1673, %v1897
  %v1899 = vpop.f32.mrf.mxu0
  %v1900 = vpop.f32.mrf.mxu0
  %v1901 = vadd.f32 %v1676, %v1900
  %v1902 = vpop.f32.mrf.mxu0
  %1903 = vmatprep.mubr.bf16.mxu0 0
  %1904 = vmatmul.mubr.bf16.gmra.mxu0 %v453
  %v1905 = vpop.f32.mrf.mxu0
  %v1906 = vadd.f32 %v1681, %v1905
  %v1907 = vpop.f32.mrf.mxu0
  %v1908 = vpop.f32.mrf.mxu0
  %v1909 = vadd.f32 %v1684, %v1908
  %v1910 = vpop.f32.mrf.mxu0
  %1911 = vmatprep.mubr.bf16.mxu0 0
  %1912 = vmatmul.mubr.bf16.gmra.mxu0 %v456
  %v1913 = vpop.f32.mrf.mxu0
  %v1914 = vadd.f32 %v1689, %v1913
  %v1915 = vpop.f32.mrf.mxu0
  %v1916 = vpop.f32.mrf.mxu0
  %v1917 = vadd.f32 %v1692, %v1916
  %v1918 = vpop.f32.mrf.mxu0
  %1919 = vmatprep.mubr.bf16.mxu0 0
  %1920 = vmatmul.mubr.bf16.gmra.mxu0 %v459
  %v1921 = vpop.f32.mrf.mxu0
  %v1922 = vadd.f32 %v1697, %v1921
  %v1923 = vpop.f32.mrf.mxu0
  %v1924 = vpop.f32.mrf.mxu0
  %v1925 = vadd.f32 %v1700, %v1924
  %v1926 = vpop.f32.mrf.mxu0
  %1927 = vmatprep.mubr.bf16.mxu0 0
  %1928 = vmatmul.mubr.bf16.gmra.mxu0 %v462
  %v1929 = vpop.f32.mrf.mxu0
  %v1930 = vadd.f32 %v1705, %v1929
  %v1931 = vpop.f32.mrf.mxu0
  %v1932 = vpop.f32.mrf.mxu0
  %v1933 = vadd.f32 %v1708, %v1932
  %v1934 = vpop.f32.mrf.mxu0
  %1935 = vmatprep.mubr.bf16.mxu0 0
  %1936 = vmatmul.mubr.bf16.gmra.mxu0 %v465
  %v1937 = vpop.f32.mrf.mxu0
  %v1938 = vadd.f32 %v1713, %v1937
  %v1939 = vpop.f32.mrf.mxu0
  %v1940 = vpop.f32.mrf.mxu0
  %v1941 = vadd.f32 %v1716, %v1940
  %v1942 = vpop.f32.mrf.mxu0
  %1943 = vmatprep.mubr.bf16.mxu0 0
  %1944 = vmatmul.mubr.bf16.gmra.mxu0 %v468
  %v1945 = vpop.f32.mrf.mxu0
  %v1946 = vadd.f32 %v1721, %v1945
  %v1947 = vpop.f32.mrf.mxu0
  %v1948 = vpop.f32.mrf.mxu0
  %v1949 = vadd.f32 %v1724, %v1948
  %v1950 = vpop.f32.mrf.mxu0
  %1951 = vmatprep.mubr.bf16.mxu0 0
  %1952 = vmatmul.mubr.bf16.gmra.mxu0 %v471
  %v1953 = vpop.f32.mrf.mxu0
  %v1954 = vadd.f32 %v1729, %v1953
  %v1955 = vpop.f32.mrf.mxu0
  %v1956 = vpop.f32.mrf.mxu0
  %v1957 = vadd.f32 %v1732, %v1956
  %v1958 = vpop.f32.mrf.mxu0
  %1959 = vmatprep.mubr.bf16.mxu0 0
  %1960 = vmatmul.mubr.bf16.gmra.mxu0 %v474
  %v1961 = vpop.f32.mrf.mxu0
  %v1962 = vadd.f32 %v1737, %v1961
  %v1963 = vpop.f32.mrf.mxu0
  %v1964 = vpop.f32.mrf.mxu0
  %v1965 = vadd.f32 %v1740, %v1964
  %v1966 = vpop.f32.mrf.mxu0
  %1967 = vmatprep.mubr.bf16.mxu0 0
  %1968 = vmatmul.mubr.bf16.gmra.mxu0 %v477
  %v1969 = vpop.f32.mrf.mxu0
  %v1970 = vadd.f32 %v1745, %v1969
  %v1971 = vpop.f32.mrf.mxu0
  %v1972 = vpop.f32.mrf.mxu0
  %v1973 = vadd.f32 %v1748, %v1972
  %v1974 = vpop.f32.mrf.mxu0
  %1975 = vmatprep.mubr.bf16.mxu0 0
  %1976 = vmatmul.mubr.bf16.gmra.mxu0 %v480
  %v1977 = vpop.f32.mrf.mxu0
  %v1978 = vadd.f32 %v1753, %v1977
  %v1979 = vpop.f32.mrf.mxu0
  %v1980 = vpop.f32.mrf.mxu0
  %v1981 = vadd.f32 %v1756, %v1980
  %v1982 = vpop.f32.mrf.mxu0
  %1983 = vmatprep.mubr.bf16.mxu0 0
  %1984 = vmatmul.mubr.bf16.gmra.mxu0 %v483
  %v1985 = vpop.f32.mrf.mxu0
  %v1986 = vadd.f32 %v1761, %v1985
  %v1987 = vpop.f32.mrf.mxu0
  %v1988 = vpop.f32.mrf.mxu0
  %v1989 = vadd.f32 %v1764, %v1988
  %v1990 = vpop.f32.mrf.mxu0
  %1991 = vdwg.mxu0
  %1992 = vst [vmem:[%s5] sm:$0xff] %v1802
  %1993 = vst [vmem:[%s5 + $0x8] sm:$0xff] %v1805
  %1994 = vst [vmem:[%s5 + $0x10] sm:$0xff] %v1810
  %1995 = vst [vmem:[%s5 + $0x18] sm:$0xff] %v1813
  %1996 = vst [vmem:[%s5 + $0x20] sm:$0xff] %v1818
  %1997 = vst [vmem:[%s5 + $0x28] sm:$0xff] %v1821
  %1998 = vst [vmem:[%s5 + $0x30] sm:$0xff] %v1826
  %1999 = vst [vmem:[%s5 + $0x38] sm:$0xff] %v1829
  %2000 = vst [vmem:[%s5 + $0x40] sm:$0xff] %v1834
  %2001 = vst [vmem:[%s5 + $0x48] sm:$0xff] %v1837
  %2002 = vst [vmem:[%s5 + $0x50] sm:$0xff] %v1842
  %2003 = vst [vmem:[%s5 + $0x58] sm:$0xff] %v1845
  %2004 = vst [vmem:[%s5 + $0x60] sm:$0xff] %v1850
  %2005 = vst [vmem:[%s5 + $0x68] sm:$0xff] %v1853
  %2006 = vst [vmem:[%s5 + $0x70] sm:$0xff] %v1858
  %2007 = vst [vmem:[%s5 + $0x78] sm:$0xff] %v1861
  %2008 = vst [vmem:[%s5 + $0x80] sm:$0xff] %v1866
  %2009 = vst [vmem:[%s5 + $0x88] sm:$0xff] %v1869
  %2010 = vst [vmem:[%s5 + $0x90] sm:$0xff] %v1874
  %2011 = vst [vmem:[%s5 + $0x98] sm:$0xff] %v1877
  %2012 = vst [vmem:[%s5 + $0xa0] sm:$0xff] %v1882
  %2013 = vst [vmem:[%s5 + $0xa8] sm:$0xff] %v1885
  %2014 = vst [vmem:[%s5 + $0xb0] sm:$0xff] %v1890
  %2015 = vst [vmem:[%s5 + $0xb8] sm:$0xff] %v1893
  %2016 = vst [vmem:[%s5 + $0xc0] sm:$0xff] %v1898
  %2017 = vst [vmem:[%s5 + $0xc8] sm:$0xff] %v1901
  %2018 = vst [vmem:[%s5 + $0xd0] sm:$0xff] %v1906
  %2019 = vst [vmem:[%s5 + $0xd8] sm:$0xff] %v1909
  %2020 = vst [vmem:[%s5 + $0xe0] sm:$0xff] %v1914
  %2021 = vst [vmem:[%s5 + $0xe8] sm:$0xff] %v1917
  %2022 = vst [vmem:[%s5 + $0xf0] sm:$0xff] %v1922
  %2023 = vst [vmem:[%s5 + $0xf8] sm:$0xff] %v1925
  %2024 = vst [vmem:[%s5 + $0x100] sm:$0xff] %v1930
  %2025 = vst [vmem:[%s5 + $0x108] sm:$0xff] %v1933
  %2026 = vst [vmem:[%s5 + $0x110] sm:$0xff] %v1938
  %2027 = vst [vmem:[%s5 + $0x118] sm:$0xff] %v1941
  %2028 = vst [vmem:[%s5 + $0x120] sm:$0xff] %v1946
  %2029 = vst [vmem:[%s5 + $0x128] sm:$0xff] %v1949
  %2030 = vst [vmem:[%s5 + $0x130] sm:$0xff] %v1954
  %2031 = vst [vmem:[%s5 + $0x138] sm:$0xff] %v1957
  %2032 = vst [vmem:[%s5 + $0x140] sm:$0xff] %v1962
  %2033 = vst [vmem:[%s5 + $0x148] sm:$0xff] %v1965
  %2034 = vst [vmem:[%s5 + $0x150] sm:$0xff] %v1970
  %2035 = vst [vmem:[%s5 + $0x158] sm:$0xff] %v1973
  %2036 = vst [vmem:[%s5 + $0x160] sm:$0xff] %v1978
  %2037 = vst [vmem:[%s5 + $0x168] sm:$0xff] %v1981
  %2038 = vst [vmem:[%s5 + $0x170] sm:$0xff] %v1986
  %2039 = vst [vmem:[%s5 + $0x178] sm:$0xff] %v1989
  // Predicated region
  $region22: #{variational_encoder_forward.1} parent=0 // pred_check
    _
  $region23: #{variational_encoder_forward.1} parent=0 // pred_check_branch
    %2041 = sbr.rel (0) target = $region25
  $region24: #{variational_encoder_forward.1} parent=0 // pred_region
    _
  $region25: #{variational_encoder_forward.1} parent=0 // pred_fallthru
    _
  // Predicated region
  $region26: #{variational_encoder_forward.1} parent=0 // pred_check
    _
  $region27: #{variational_encoder_forward.1} parent=0 // pred_check_branch
    %2043 = sbr.rel (0) target = $region29
  $region28: #{variational_encoder_forward.1} parent=0 // pred_region
    _
  $region29: #{variational_encoder_forward.1} parent=0 // pred_fallthru
    _

</llo_original>
